<compile_context>
chip_gen: v7x
topology: tpu7x:2x2x1
jax: 0.10.0
libtpu: 0.0.40
codegen_flags: <defaults>
</compile_context>

<pallas_src>
import functools

import numpy as np
import jax
import jax.numpy as jnp
from jax.experimental import pallas as pl
from jax.experimental.pallas import tpu as pltpu

MAX_LEVEL = 4          # max_level in the PyTorch module
NUM_DETAIL = 3         # LH, HL, HH per level (2-orientation separable bank)
_KILL = 1e30           # soft-threshold value that exactly zeroes a quadrant


# ---------- host-side (trace-time) Haar filter construction (NumPy) ----------

def _haar_pair(n):
    """Orthonormal Haar analysis pair lo, hi of shape (n//2, n)."""
    h = n // 2
    s = 1.0 / np.sqrt(2.0)
    lo = np.zeros((h, n), np.float64)
    hi = np.zeros((h, n), np.float64)
    for j in range(h):
        lo[j, 2 * j] = s
        lo[j, 2 * j + 1] = s
        hi[j, 2 * j] = s
        hi[j, 2 * j + 1] = -s
    return lo, hi


def _cumulative_filters(hw, batch, max_level):
    """Cumulative multi-level Haar filters, 4 matrices per level:
       R_k  = [L_{k+1}; H_k]                        (2m, hw)    row analysis
       M_k  = [kron(I_B, L^T) | kron(I_B, H^T)]     (B*hw, 2Bm) col analysis
       Sr_k = [L^T | H^T]                           (hw, 2m)    row synthesis
       Sc_k = [kron(I_B, L); kron(I_B, H)]          (2Bm, B*hw) col synthesis
    where L = L_{k+1} (cumulative low-pass), H = H_k (level-k high-pass),
    m = hw >> (k+1)."""
    eye_b = np.eye(batch)
    mats = []
    L = np.eye(hw)
    for k in range(max_level):
        lo, hi = _haar_pair(hw >> k)
        Lk1 = lo @ L                 # (m, hw)
        Hk = hi @ L                  # (m, hw)
        mats.append((
            np.vstack([Lk1, Hk]).astype(np.float32),
            np.hstack([np.kron(eye_b, Lk1.T),
                       np.kron(eye_b, Hk.T)]).astype(np.float32),
            np.hstack([Lk1.T, Hk.T]).astype(np.float32),
            np.vstack([np.kron(eye_b, Lk1),
                       np.kron(eye_b, Hk)]).astype(np.float32),
        ))
        L = Lk1
    return mats


# ------------------------------- Pallas kernel -------------------------------

def _make_kernel(b, h, max_level):
    w = h
    n_filt = 4 * max_level

    def kernel(*refs):
        x_ref, thr_ref = refs[0], refs[1]
        filt = refs[2:2 + n_filt]
        out_ref = refs[2 + n_filt]
        slab_ref = refs[3 + n_filt]            # VMEM scratch (h, b*w)

        # ---- batch -> lane interleave: (B,H,W) ref -> lane-dense (H, B*W) ----
        for bb in range(b):
            slab_ref[:, bb * w:(bb + 1) * w] = x_ref[bb]
        slab = slab_ref[...]

        # ---- hoist all threshold scalar reads out of the level loop ----
        thr = [thr_ref[i] for i in range(max_level * NUM_DETAIL)]

        rec = None
        for k in range(max_level):
            m = h >> (k + 1)
            r_ref, m_ref, sr_ref, sc_ref = filt[4 * k:4 * k + 4]

            # forward: one row matmul + one (lane-stacked) column matmul
            rx = jnp.dot(r_ref[...], slab,
                         preferred_element_type=jnp.float32)       # (2m, B*H)
            f = jnp.dot(rx, m_ref[...],
                        preferred_element_type=jnp.float32)        # (2m, 2*B*m)
            # quadrants of f: [[LL_{k+1} | LH_k]; [HL_k | HH_k]] (per batch)

            # soft-threshold map: LH/HL/HH get their learned thresholds;
            # the LL quadrant gets 0 at the deepest level (identity) and a
            # huge value otherwise (exactly zeroed -> no double counting).
            rows = jax.lax.broadcasted_iota(jnp.int32, f.shape, 0)
            cols = jax.lax.broadcasted_iota(jnp.int32, f.shape, 1)
            ll_thr = 0.0 if k == max_level - 1 else _KILL
            # TODO(synk): LH/HL orientation labelling keeps the previous
            # kernel's convention; verify against the PyTorch library's
            # sub-band ordering since thresholds differ per orientation.
            tmap = jnp.where(rows < m,
                             jnp.where(cols < b * m, ll_thr, thr[3 * k + 0]),
                             jnp.where(cols < b * m, thr[3 * k + 1],
                                       thr[3 * k + 2]))
            g = jnp.maximum(f - tmap, 0.0) - jnp.maximum(-f - tmap, 0.0)

            # inverse: one column matmul + one row matmul, summed over levels
            gc = jnp.dot(g, sc_ref[...],
                         preferred_element_type=jnp.float32)       # (2m, B*H)
            contrib = jnp.dot(sr_ref[...], gc,
                              preferred_element_type=jnp.float32)  # (H, B*W)
            rec = contrib if rec is None else rec + contrib

        # ---- lane -> batch de-interleave: (H, B*W) -> (B,H,W) output ----
        slab_ref[...] = rec
        for bb in range(b):
            out_ref[bb] = slab_ref[:, bb * w:(bb + 1) * w]

    return kernel


# --------------------------------- wrapper ---------------------------------

@functools.partial(jax.jit, static_argnames=("max_level",))
def haar_soft_threshold_2d(x, thresholds, max_level: int = MAX_LEVEL):
    """x: (N, C, H, W) float32.  thresholds: (max_level * 3,) float32, >= 0."""
    N, C, H, W = x.shape
    assert H == W, "square spatial dims assumed"
    assert H % (1 << max_level) == 0, "spatial size must be divisible by 2**max_level"
    B = N * C

    xb = x.astype(jnp.float32).reshape(B, H, W)          # free reshape, no copy
    filts = [jnp.asarray(a)
             for mats in _cumulative_filters(H, B, max_level) for a in mats]

    vmem = pl.BlockSpec(memory_space=pltpu.MemorySpace.VMEM)
    smem = pl.BlockSpec(memory_space=pltpu.MemorySpace.SMEM)

    out = pl.pallas_call(
        _make_kernel(B, H, max_level),
        out_shape=jax.ShapeDtypeStruct((B, H, W), jnp.float32),
        in_specs=[vmem, smem] + [vmem] * len(filts),
        out_specs=vmem,
        scratch_shapes=[pltpu.VMEM((H, B * W), jnp.float32)],
    )(xb, thresholds.astype(jnp.float32), *filts)

    return out.reshape(N, C, H, W)


# ------------------------- pure-NumPy reference model -------------------------

def _soft_np(v, t):
    return np.maximum(v - t, 0.0) - np.maximum(-v - t, 0.0)


def _reference(x, thr, max_level):
    """Straightforward recursive per-level 2-D Haar DWT + soft-threshold +
    inverse DWT (independent of the cumulative-filter trick)."""
    N, C, H, W = x.shape
    out = np.empty((N, C, H, W), np.float64)
    xb = x.astype(np.float64)
    for n in range(N):
        for c in range(C):
            ll = xb[n, c]
            details = []
            for k in range(max_level):
                lo, hi = _haar_pair(ll.shape[0])
                lo_r, hi_r = lo @ ll, hi @ ll
                LL, LH = lo_r @ lo.T, lo_r @ hi.T
                HL, HH = hi_r @ lo.T, hi_r @ hi.T
                details.append((_soft_np(LH, thr[3 * k + 0]),
                                _soft_np(HL, thr[3 * k + 1]),
                                _soft_np(HH, thr[3 * k + 2])))
                ll = LL
            rec = ll
            for k in reversed(range(max_level)):
                lo, hi = _haar_pair(H >> k)
                LH, HL, HH = details[k]
                rec = lo.T @ (rec @ lo + LH @ hi) + hi.T @ (HL @ lo + HH @ hi)
            out[n, c] = rec
    return out.astype(np.float32)


if __name__ == "__main__":
    key = jax.random.PRNGKey(0)
    x = jax.random.normal(key, (2, 4, 16, 16), dtype=jnp.float32)

    # Deterministic "learned" soft-thresholds: one per (level, detail sub-band).
    # TODO(synk): the original denoising_neural_network's exact parameterisation
    # is not available; per-(level, sub-band) non-negative scalar soft-thresholds
    # are used as the stand-in.
    lvls = jnp.arange(MAX_LEVEL, dtype=jnp.float32)[:, None]
    orients = jnp.arange(NUM_DETAIL, dtype=jnp.float32)[None, :]
    thresholds = (0.05 * (lvls + 1.0) + 0.01 * orients).reshape(-1)

    out = jax.block_until_ready(haar_soft_threshold_2d(x, thresholds))
    assert out.shape == x.shape and out.dtype == jnp.float32

    # Check 1: zero thresholds -> orthonormal analysis/synthesis reconstructs x.
    recon = jax.block_until_ready(
        haar_soft_threshold_2d(x, jnp.zeros_like(thresholds)))
    assert float(jnp.max(jnp.abs(recon - x))) < 1e-3

    # Check 2: full thresholded path matches the independent NumPy reference.
    ref = _reference(np.asarray(x), np.asarray(thresholds), MAX_LEVEL)
    assert float(np.max(np.abs(np.asarray(out) - ref))) < 1e-3

    print("KERNEL_OK")
</pallas_src>

<mosaic_0001>
module attributes {stable_mosaic.version = 11 : i64} {
  func.func @kernel(%arg0: memref<8x16x16xf32, #tpu.memory_space<vmem>>, %arg1: memref<12xf32, #tpu.memory_space<smem>>, %arg2: memref<16x16xf32, #tpu.memory_space<vmem>>, %arg3: memref<128x128xf32, #tpu.memory_space<vmem>>, %arg4: memref<16x16xf32, #tpu.memory_space<vmem>>, %arg5: memref<128x128xf32, #tpu.memory_space<vmem>>, %arg6: memref<8x16xf32, #tpu.memory_space<vmem>>, %arg7: memref<128x64xf32, #tpu.memory_space<vmem>>, %arg8: memref<16x8xf32, #tpu.memory_space<vmem>>, %arg9: memref<64x128xf32, #tpu.memory_space<vmem>>, %arg10: memref<4x16xf32, #tpu.memory_space<vmem>>, %arg11: memref<128x32xf32, #tpu.memory_space<vmem>>, %arg12: memref<16x4xf32, #tpu.memory_space<vmem>>, %arg13: memref<32x128xf32, #tpu.memory_space<vmem>>, %arg14: memref<2x16xf32, #tpu.memory_space<vmem>>, %arg15: memref<128x16xf32, #tpu.memory_space<vmem>>, %arg16: memref<16x2xf32, #tpu.memory_space<vmem>>, %arg17: memref<16x128xf32, #tpu.memory_space<vmem>>, %arg18: memref<8x16x16xf32, #tpu.memory_space<vmem>>, %arg19: memref<16x128xf32, #tpu.memory_space<vmem>>) attributes {dimension_semantics = [], scalar_prefetch = 0 : i64, scratch_operands = 1 : i64, tpu.core_type = #tpu.core_type<tc>} {
    %c0 = arith.constant 0 : index
    %c0_0 = arith.constant 0 : index
    %c0_1 = arith.constant 0 : index
    %0 = vector.load %arg0[%c0, %c0_0, %c0_1] : memref<8x16x16xf32, #tpu.memory_space<vmem>>, vector<1x16x16xf32>
    %1 = vector.shape_cast %0 : vector<1x16x16xf32> to vector<16x16xf32>
    %c0_2 = arith.constant 0 : index
    %c0_3 = arith.constant 0 : index
    %2 = vector.load %arg19[%c0_2, %c0_3] : memref<16x128xf32, #tpu.memory_space<vmem>>, vector<16x16xf32>
    tpu.vector_store %arg19[%c0_2, %c0_3], %1 {strides = array<i32>} : memref<16x128xf32, #tpu.memory_space<vmem>>, vector<16x16xf32>,
    %c1 = arith.constant 1 : index
    %c0_4 = arith.constant 0 : index
    %c0_5 = arith.constant 0 : index
    %3 = vector.load %arg0[%c1, %c0_4, %c0_5] : memref<8x16x16xf32, #tpu.memory_space<vmem>>, vector<1x16x16xf32>
    %4 = vector.shape_cast %3 : vector<1x16x16xf32> to vector<16x16xf32>
    %c0_6 = arith.constant 0 : index
    %c16 = arith.constant 16 : index
    %5 = vector.load %arg19[%c0_6, %c16] : memref<16x128xf32, #tpu.memory_space<vmem>>, vector<16x16xf32>
    tpu.vector_store %arg19[%c0_6, %c16], %4 {strides = array<i32>} : memref<16x128xf32, #tpu.memory_space<vmem>>, vector<16x16xf32>,
    %c2 = arith.constant 2 : index
    %c0_7 = arith.constant 0 : index
    %c0_8 = arith.constant 0 : index
    %6 = vector.load %arg0[%c2, %c0_7, %c0_8] : memref<8x16x16xf32, #tpu.memory_space<vmem>>, vector<1x16x16xf32>
    %7 = vector.shape_cast %6 : vector<1x16x16xf32> to vector<16x16xf32>
    %c0_9 = arith.constant 0 : index
    %c32 = arith.constant 32 : index
    %8 = vector.load %arg19[%c0_9, %c32] : memref<16x128xf32, #tpu.memory_space<vmem>>, vector<16x16xf32>
    tpu.vector_store %arg19[%c0_9, %c32], %7 {strides = array<i32>} : memref<16x128xf32, #tpu.memory_space<vmem>>, vector<16x16xf32>,
    %c3 = arith.constant 3 : index
    %c0_10 = arith.constant 0 : index
    %c0_11 = arith.constant 0 : index
    %9 = vector.load %arg0[%c3, %c0_10, %c0_11] : memref<8x16x16xf32, #tpu.memory_space<vmem>>, vector<1x16x16xf32>
    %10 = vector.shape_cast %9 : vector<1x16x16xf32> to vector<16x16xf32>
    %c0_12 = arith.constant 0 : index
    %c48 = arith.constant 48 : index
    %11 = vector.load %arg19[%c0_12, %c48] : memref<16x128xf32, #tpu.memory_space<vmem>>, vector<16x16xf32>
    tpu.vector_store %arg19[%c0_12, %c48], %10 {strides = array<i32>} : memref<16x128xf32, #tpu.memory_space<vmem>>, vector<16x16xf32>,
    %c4 = arith.constant 4 : index
    %c0_13 = arith.constant 0 : index
    %c0_14 = arith.constant 0 : index
    %12 = vector.load %arg0[%c4, %c0_13, %c0_14] : memref<8x16x16xf32, #tpu.memory_space<vmem>>, vector<1x16x16xf32>
    %13 = vector.shape_cast %12 : vector<1x16x16xf32> to vector<16x16xf32>
    %c0_15 = arith.constant 0 : index
    %c64 = arith.constant 64 : index
    %14 = vector.load %arg19[%c0_15, %c64] : memref<16x128xf32, #tpu.memory_space<vmem>>, vector<16x16xf32>
    tpu.vector_store %arg19[%c0_15, %c64], %13 {strides = array<i32>} : memref<16x128xf32, #tpu.memory_space<vmem>>, vector<16x16xf32>,
    %c5 = arith.constant 5 : index
    %c0_16 = arith.constant 0 : index
    %c0_17 = arith.constant 0 : index
    %15 = vector.load %arg0[%c5, %c0_16, %c0_17] : memref<8x16x16xf32, #tpu.memory_space<vmem>>, vector<1x16x16xf32>
    %16 = vector.shape_cast %15 : vector<1x16x16xf32> to vector<16x16xf32>
    %c0_18 = arith.constant 0 : index
    %c80 = arith.constant 80 : index
    %17 = vector.load %arg19[%c0_18, %c80] : memref<16x128xf32, #tpu.memory_space<vmem>>, vector<16x16xf32>
    tpu.vector_store %arg19[%c0_18, %c80], %16 {strides = array<i32>} : memref<16x128xf32, #tpu.memory_space<vmem>>, vector<16x16xf32>,
    %c6 = arith.constant 6 : index
    %c0_19 = arith.constant 0 : index
    %c0_20 = arith.constant 0 : index
    %18 = vector.load %arg0[%c6, %c0_19, %c0_20] : memref<8x16x16xf32, #tpu.memory_space<vmem>>, vector<1x16x16xf32>
    %19 = vector.shape_cast %18 : vector<1x16x16xf32> to vector<16x16xf32>
    %c0_21 = arith.constant 0 : index
    %c96 = arith.constant 96 : index
    %20 = vector.load %arg19[%c0_21, %c96] : memref<16x128xf32, #tpu.memory_space<vmem>>, vector<16x16xf32>
    tpu.vector_store %arg19[%c0_21, %c96], %19 {strides = array<i32>} : memref<16x128xf32, #tpu.memory_space<vmem>>, vector<16x16xf32>,
    %c7 = arith.constant 7 : index
    %c0_22 = arith.constant 0 : index
    %c0_23 = arith.constant 0 : index
    %21 = vector.load %arg0[%c7, %c0_22, %c0_23] : memref<8x16x16xf32, #tpu.memory_space<vmem>>, vector<1x16x16xf32>
    %22 = vector.shape_cast %21 : vector<1x16x16xf32> to vector<16x16xf32>
    %c0_24 = arith.constant 0 : index
    %c112 = arith.constant 112 : index
    %23 = vector.load %arg19[%c0_24, %c112] : memref<16x128xf32, #tpu.memory_space<vmem>>, vector<16x16xf32>
    tpu.vector_store %arg19[%c0_24, %c112], %22 {strides = array<i32>} : memref<16x128xf32, #tpu.memory_space<vmem>>, vector<16x16xf32>,
    %c0_25 = arith.constant 0 : index
    %c0_26 = arith.constant 0 : index
    %24 = vector.load %arg19[%c0_25, %c0_26] : memref<16x128xf32, #tpu.memory_space<vmem>>, vector<16x128xf32>
    %c0_27 = arith.constant 0 : index
    %25 = memref.load %arg1[%c0_27] : memref<12xf32, #tpu.memory_space<smem>>
    %c1_28 = arith.constant 1 : index
    %26 = memref.load %arg1[%c1_28] : memref<12xf32, #tpu.memory_space<smem>>
    %c2_29 = arith.constant 2 : index
    %27 = memref.load %arg1[%c2_29] : memref<12xf32, #tpu.memory_space<smem>>
    %c3_30 = arith.constant 3 : index
    %28 = memref.load %arg1[%c3_30] : memref<12xf32, #tpu.memory_space<smem>>
    %c4_31 = arith.constant 4 : index
    %29 = memref.load %arg1[%c4_31] : memref<12xf32, #tpu.memory_space<smem>>
    %c5_32 = arith.constant 5 : index
    %30 = memref.load %arg1[%c5_32] : memref<12xf32, #tpu.memory_space<smem>>
    %c6_33 = arith.constant 6 : index
    %31 = memref.load %arg1[%c6_33] : memref<12xf32, #tpu.memory_space<smem>>
    %c7_34 = arith.constant 7 : index
    %32 = memref.load %arg1[%c7_34] : memref<12xf32, #tpu.memory_space<smem>>
    %c8 = arith.constant 8 : index
    %33 = memref.load %arg1[%c8] : memref<12xf32, #tpu.memory_space<smem>>
    %c9 = arith.constant 9 : index
    %34 = memref.load %arg1[%c9] : memref<12xf32, #tpu.memory_space<smem>>
    %c10 = arith.constant 10 : index
    %35 = memref.load %arg1[%c10] : memref<12xf32, #tpu.memory_space<smem>>
    %c11 = arith.constant 11 : index
    %36 = memref.load %arg1[%c11] : memref<12xf32, #tpu.memory_space<smem>>
    %c0_35 = arith.constant 0 : index
    %c0_36 = arith.constant 0 : index
    %37 = vector.load %arg2[%c0_35, %c0_36] : memref<16x16xf32, #tpu.memory_space<vmem>>, vector<16x16xf32>
    %cst = arith.constant dense<0.000000e+00> : vector<16x128xf32>
    %38 = tpu.matmul %37, %24, %cst {dimension_numbers = #tpu.dot_dimension_numbers<[1], [0], [0], [1], [0, 0, 1, 1], [], []>} : vector<16x16xf32>, vector<16x128xf32>, vector<16x128xf32> -> vector<16x128xf32>
    %c0_37 = arith.constant 0 : index
    %c0_38 = arith.constant 0 : index
    %39 = vector.load %arg3[%c0_37, %c0_38] : memref<128x128xf32, #tpu.memory_space<vmem>>, vector<128x128xf32>
    %cst_39 = arith.constant dense<0.000000e+00> : vector<16x128xf32>
    %40 = tpu.matmul %38, %39, %cst_39 {dimension_numbers = #tpu.dot_dimension_numbers<[1], [0], [0], [1], [0, 0, 1, 1], [], []>} : vector<16x128xf32>, vector<128x128xf32>, vector<16x128xf32> -> vector<16x128xf32>
    %41 = tpu.iota {dimensions = array<i32: 0>} : vector<16x128xi32>
    %42 = tpu.iota {dimensions = array<i32: 1>} : vector<16x128xi32>
    %c8_i32 = arith.constant 8 : i32
    %43 = vector.broadcast %c8_i32 : i32 to vector<16x128xi32>
    %44 = arith.cmpi slt, %41, %43 : vector<16x128xi32>
    %c64_i32 = arith.constant 64 : i32
    %45 = vector.broadcast %c64_i32 : i32 to vector<16x128xi32>
    %46 = arith.cmpi slt, %42, %45 : vector<16x128xi32>
    %cst_40 = arith.constant 1.000000e+30 : f32
    %47 = vector.broadcast %cst_40 : f32 to vector<16x128xf32>
    %48 = vector.broadcast %25 : f32 to vector<16x128xf32>
    %49 = arith.select %46, %47, %48 : vector<16x128xi1>, vector<16x128xf32>
    %c64_i32_41 = arith.constant 64 : i32
    %50 = vector.broadcast %c64_i32_41 : i32 to vector<16x128xi32>
    %51 = arith.cmpi slt, %42, %50 : vector<16x128xi32>
    %52 = vector.broadcast %26 : f32 to vector<16x128xf32>
    %53 = vector.broadcast %27 : f32 to vector<16x128xf32>
    %54 = arith.select %51, %52, %53 : vector<16x128xi1>, vector<16x128xf32>
    %55 = arith.select %44, %49, %54 : vector<16x128xi1>, vector<16x128xf32>
    %56 = arith.subf %40, %55 : vector<16x128xf32>
    %cst_42 = arith.constant 0.000000e+00 : f32
    %57 = vector.broadcast %cst_42 : f32 to vector<16x128xf32>
    %58 = arith.maximumf %56, %57 : vector<16x128xf32>
    %cst_43 = arith.constant 0.000000e+00 : f32
    %59 = vector.broadcast %cst_43 : f32 to vector<16x128xf32>
    %60 = arith.subf %59, %40 : vector<16x128xf32>
    %61 = arith.subf %60, %55 : vector<16x128xf32>
    %cst_44 = arith.constant 0.000000e+00 : f32
    %62 = vector.broadcast %cst_44 : f32 to vector<16x128xf32>
    %63 = arith.maximumf %61, %62 : vector<16x128xf32>
    %64 = arith.subf %58, %63 : vector<16x128xf32>
    %c0_45 = arith.constant 0 : index
    %c0_46 = arith.constant 0 : index
    %65 = vector.load %arg5[%c0_45, %c0_46] : memref<128x128xf32, #tpu.memory_space<vmem>>, vector<128x128xf32>
    %cst_47 = arith.constant dense<0.000000e+00> : vector<16x128xf32>
    %66 = tpu.matmul %64, %65, %cst_47 {dimension_numbers = #tpu.dot_dimension_numbers<[1], [0], [0], [1], [0, 0, 1, 1], [], []>} : vector<16x128xf32>, vector<128x128xf32>, vector<16x128xf32> -> vector<16x128xf32>
    %c0_48 = arith.constant 0 : index
    %c0_49 = arith.constant 0 : index
    %67 = vector.load %arg4[%c0_48, %c0_49] : memref<16x16xf32, #tpu.memory_space<vmem>>, vector<16x16xf32>
    %cst_50 = arith.constant dense<0.000000e+00> : vector<16x128xf32>
    %68 = tpu.matmul %67, %66, %cst_50 {dimension_numbers = #tpu.dot_dimension_numbers<[1], [0], [0], [1], [0, 0, 1, 1], [], []>} : vector<16x16xf32>, vector<16x128xf32>, vector<16x128xf32> -> vector<16x128xf32>
    %c0_51 = arith.constant 0 : index
    %c0_52 = arith.constant 0 : index
    %69 = vector.load %arg6[%c0_51, %c0_52] : memref<8x16xf32, #tpu.memory_space<vmem>>, vector<8x16xf32>
    %cst_53 = arith.constant dense<0.000000e+00> : vector<8x128xf32>
    %70 = tpu.matmul %69, %24, %cst_53 {dimension_numbers = #tpu.dot_dimension_numbers<[1], [0], [0], [1], [0, 0, 1, 1], [], []>} : vector<8x16xf32>, vector<16x128xf32>, vector<8x128xf32> -> vector<8x128xf32>
    %c0_54 = arith.constant 0 : index
    %c0_55 = arith.constant 0 : index
    %71 = vector.load %arg7[%c0_54, %c0_55] : memref<128x64xf32, #tpu.memory_space<vmem>>, vector<128x64xf32>
    %cst_56 = arith.constant dense<0.000000e+00> : vector<8x64xf32>
    %72 = tpu.matmul %70, %71, %cst_56 {dimension_numbers = #tpu.dot_dimension_numbers<[1], [0], [0], [1], [0, 0, 1, 1], [], []>} : vector<8x128xf32>, vector<128x64xf32>, vector<8x64xf32> -> vector<8x64xf32>
    %73 = tpu.iota {dimensions = array<i32: 0>} : vector<8x64xi32>
    %74 = tpu.iota {dimensions = array<i32: 1>} : vector<8x64xi32>
    %c4_i32 = arith.constant 4 : i32
    %75 = vector.broadcast %c4_i32 : i32 to vector<8x64xi32>
    %76 = arith.cmpi slt, %73, %75 : vector<8x64xi32>
    %c32_i32 = arith.constant 32 : i32
    %77 = vector.broadcast %c32_i32 : i32 to vector<8x64xi32>
    %78 = arith.cmpi slt, %74, %77 : vector<8x64xi32>
    %cst_57 = arith.constant 1.000000e+30 : f32
    %79 = vector.broadcast %cst_57 : f32 to vector<8x64xf32>
    %80 = vector.broadcast %28 : f32 to vector<8x64xf32>
    %81 = arith.select %78, %79, %80 : vector<8x64xi1>, vector<8x64xf32>
    %c32_i32_58 = arith.constant 32 : i32
    %82 = vector.broadcast %c32_i32_58 : i32 to vector<8x64xi32>
    %83 = arith.cmpi slt, %74, %82 : vector<8x64xi32>
    %84 = vector.broadcast %29 : f32 to vector<8x64xf32>
    %85 = vector.broadcast %30 : f32 to vector<8x64xf32>
    %86 = arith.select %83, %84, %85 : vector<8x64xi1>, vector<8x64xf32>
    %87 = arith.select %76, %81, %86 : vector<8x64xi1>, vector<8x64xf32>
    %88 = arith.subf %72, %87 : vector<8x64xf32>
    %cst_59 = arith.constant 0.000000e+00 : f32
    %89 = vector.broadcast %cst_59 : f32 to vector<8x64xf32>
    %90 = arith.maximumf %88, %89 : vector<8x64xf32>
    %cst_60 = arith.constant 0.000000e+00 : f32
    %91 = vector.broadcast %cst_60 : f32 to vector<8x64xf32>
    %92 = arith.subf %91, %72 : vector<8x64xf32>
    %93 = arith.subf %92, %87 : vector<8x64xf32>
    %cst_61 = arith.constant 0.000000e+00 : f32
    %94 = vector.broadcast %cst_61 : f32 to vector<8x64xf32>
    %95 = arith.maximumf %93, %94 : vector<8x64xf32>
    %96 = arith.subf %90, %95 : vector<8x64xf32>
    %c0_62 = arith.constant 0 : index
    %c0_63 = arith.constant 0 : index
    %97 = vector.load %arg9[%c0_62, %c0_63] : memref<64x128xf32, #tpu.memory_space<vmem>>, vector<64x128xf32>
    %cst_64 = arith.constant dense<0.000000e+00> : vector<8x128xf32>
    %98 = tpu.matmul %96, %97, %cst_64 {dimension_numbers = #tpu.dot_dimension_numbers<[1], [0], [0], [1], [0, 0, 1, 1], [], []>} : vector<8x64xf32>, vector<64x128xf32>, vector<8x128xf32> -> vector<8x128xf32>
    %c0_65 = arith.constant 0 : index
    %c0_66 = arith.constant 0 : index
    %99 = vector.load %arg8[%c0_65, %c0_66] : memref<16x8xf32, #tpu.memory_space<vmem>>, vector<16x8xf32>
    %cst_67 = arith.constant dense<0.000000e+00> : vector<16x128xf32>
    %100 = tpu.matmul %99, %98, %cst_67 {dimension_numbers = #tpu.dot_dimension_numbers<[1], [0], [0], [1], [0, 0, 1, 1], [], []>} : vector<16x8xf32>, vector<8x128xf32>, vector<16x128xf32> -> vector<16x128xf32>
    %101 = arith.addf %68, %100 : vector<16x128xf32>
    %c0_68 = arith.constant 0 : index
    %c0_69 = arith.constant 0 : index
    %102 = vector.load %arg10[%c0_68, %c0_69] : memref<4x16xf32, #tpu.memory_space<vmem>>, vector<4x16xf32>
    %cst_70 = arith.constant dense<0.000000e+00> : vector<4x128xf32>
    %103 = tpu.matmul %102, %24, %cst_70 {dimension_numbers = #tpu.dot_dimension_numbers<[1], [0], [0], [1], [0, 0, 1, 1], [], []>} : vector<4x16xf32>, vector<16x128xf32>, vector<4x128xf32> -> vector<4x128xf32>
    %c0_71 = arith.constant 0 : index
    %c0_72 = arith.constant 0 : index
    %104 = vector.load %arg11[%c0_71, %c0_72] : memref<128x32xf32, #tpu.memory_space<vmem>>, vector<128x32xf32>
    %cst_73 = arith.constant dense<0.000000e+00> : vector<4x32xf32>
    %105 = tpu.matmul %103, %104, %cst_73 {dimension_numbers = #tpu.dot_dimension_numbers<[1], [0], [0], [1], [0, 0, 1, 1], [], []>} : vector<4x128xf32>, vector<128x32xf32>, vector<4x32xf32> -> vector<4x32xf32>
    %106 = tpu.iota {dimensions = array<i32: 0>} : vector<4x32xi32>
    %107 = tpu.iota {dimensions = array<i32: 1>} : vector<4x32xi32>
    %c2_i32 = arith.constant 2 : i32
    %108 = vector.broadcast %c2_i32 : i32 to vector<4x32xi32>
    %109 = arith.cmpi slt, %106, %108 : vector<4x32xi32>
    %c16_i32 = arith.constant 16 : i32
    %110 = vector.broadcast %c16_i32 : i32 to vector<4x32xi32>
    %111 = arith.cmpi slt, %107, %110 : vector<4x32xi32>
    %cst_74 = arith.constant 1.000000e+30 : f32
    %112 = vector.broadcast %cst_74 : f32 to vector<4x32xf32>
    %113 = vector.broadcast %31 : f32 to vector<4x32xf32>
    %114 = arith.select %111, %112, %113 : vector<4x32xi1>, vector<4x32xf32>
    %c16_i32_75 = arith.constant 16 : i32
    %115 = vector.broadcast %c16_i32_75 : i32 to vector<4x32xi32>
    %116 = arith.cmpi slt, %107, %115 : vector<4x32xi32>
    %117 = vector.broadcast %32 : f32 to vector<4x32xf32>
    %118 = vector.broadcast %33 : f32 to vector<4x32xf32>
    %119 = arith.select %116, %117, %118 : vector<4x32xi1>, vector<4x32xf32>
    %120 = arith.select %109, %114, %119 : vector<4x32xi1>, vector<4x32xf32>
    %121 = arith.subf %105, %120 : vector<4x32xf32>
    %cst_76 = arith.constant 0.000000e+00 : f32
    %122 = vector.broadcast %cst_76 : f32 to vector<4x32xf32>
    %123 = arith.maximumf %121, %122 : vector<4x32xf32>
    %cst_77 = arith.constant 0.000000e+00 : f32
    %124 = vector.broadcast %cst_77 : f32 to vector<4x32xf32>
    %125 = arith.subf %124, %105 : vector<4x32xf32>
    %126 = arith.subf %125, %120 : vector<4x32xf32>
    %cst_78 = arith.constant 0.000000e+00 : f32
    %127 = vector.broadcast %cst_78 : f32 to vector<4x32xf32>
    %128 = arith.maximumf %126, %127 : vector<4x32xf32>
    %129 = arith.subf %123, %128 : vector<4x32xf32>
    %c0_79 = arith.constant 0 : index
    %c0_80 = arith.constant 0 : index
    %130 = vector.load %arg13[%c0_79, %c0_80] : memref<32x128xf32, #tpu.memory_space<vmem>>, vector<32x128xf32>
    %cst_81 = arith.constant dense<0.000000e+00> : vector<4x128xf32>
    %131 = tpu.matmul %129, %130, %cst_81 {dimension_numbers = #tpu.dot_dimension_numbers<[1], [0], [0], [1], [0, 0, 1, 1], [], []>} : vector<4x32xf32>, vector<32x128xf32>, vector<4x128xf32> -> vector<4x128xf32>
    %c0_82 = arith.constant 0 : index
    %c0_83 = arith.constant 0 : index
    %132 = vector.load %arg12[%c0_82, %c0_83] : memref<16x4xf32, #tpu.memory_space<vmem>>, vector<16x4xf32>
    %cst_84 = arith.constant dense<0.000000e+00> : vector<16x128xf32>
    %133 = tpu.matmul %132, %131, %cst_84 {dimension_numbers = #tpu.dot_dimension_numbers<[1], [0], [0], [1], [0, 0, 1, 1], [], []>} : vector<16x4xf32>, vector<4x128xf32>, vector<16x128xf32> -> vector<16x128xf32>
    %134 = arith.addf %101, %133 : vector<16x128xf32>
    %c0_85 = arith.constant 0 : index
    %c0_86 = arith.constant 0 : index
    %135 = vector.load %arg14[%c0_85, %c0_86] : memref<2x16xf32, #tpu.memory_space<vmem>>, vector<2x16xf32>
    %cst_87 = arith.constant dense<0.000000e+00> : vector<2x128xf32>
    %136 = tpu.matmul %135, %24, %cst_87 {dimension_numbers = #tpu.dot_dimension_numbers<[1], [0], [0], [1], [0, 0, 1, 1], [], []>} : vector<2x16xf32>, vector<16x128xf32>, vector<2x128xf32> -> vector<2x128xf32>
    %c0_88 = arith.constant 0 : index
    %c0_89 = arith.constant 0 : index
    %137 = vector.load %arg15[%c0_88, %c0_89] : memref<128x16xf32, #tpu.memory_space<vmem>>, vector<128x16xf32>
    %cst_90 = arith.constant dense<0.000000e+00> : vector<2x16xf32>
    %138 = tpu.matmul %136, %137, %cst_90 {dimension_numbers = #tpu.dot_dimension_numbers<[1], [0], [0], [1], [0, 0, 1, 1], [], []>} : vector<2x128xf32>, vector<128x16xf32>, vector<2x16xf32> -> vector<2x16xf32>
    %139 = tpu.iota {dimensions = array<i32: 0>} : vector<2x16xi32>
    %140 = tpu.iota {dimensions = array<i32: 1>} : vector<2x16xi32>
    %c1_i32 = arith.constant 1 : i32
    %141 = vector.broadcast %c1_i32 : i32 to vector<2x16xi32>
    %142 = arith.cmpi slt, %139, %141 : vector<2x16xi32>
    %c8_i32_91 = arith.constant 8 : i32
    %143 = vector.broadcast %c8_i32_91 : i32 to vector<2x16xi32>
    %144 = arith.cmpi slt, %140, %143 : vector<2x16xi32>
    %cst_92 = arith.constant 0.000000e+00 : f32
    %145 = vector.broadcast %cst_92 : f32 to vector<2x16xf32>
    %146 = vector.broadcast %34 : f32 to vector<2x16xf32>
    %147 = arith.select %144, %145, %146 : vector<2x16xi1>, vector<2x16xf32>
    %c8_i32_93 = arith.constant 8 : i32
    %148 = vector.broadcast %c8_i32_93 : i32 to vector<2x16xi32>
    %149 = arith.cmpi slt, %140, %148 : vector<2x16xi32>
    %150 = vector.broadcast %35 : f32 to vector<2x16xf32>
    %151 = vector.broadcast %36 : f32 to vector<2x16xf32>
    %152 = arith.select %149, %150, %151 : vector<2x16xi1>, vector<2x16xf32>
    %153 = arith.select %142, %147, %152 : vector<2x16xi1>, vector<2x16xf32>
    %154 = arith.subf %138, %153 : vector<2x16xf32>
    %cst_94 = arith.constant 0.000000e+00 : f32
    %155 = vector.broadcast %cst_94 : f32 to vector<2x16xf32>
    %156 = arith.maximumf %154, %155 : vector<2x16xf32>
    %cst_95 = arith.constant 0.000000e+00 : f32
    %157 = vector.broadcast %cst_95 : f32 to vector<2x16xf32>
    %158 = arith.subf %157, %138 : vector<2x16xf32>
    %159 = arith.subf %158, %153 : vector<2x16xf32>
    %cst_96 = arith.constant 0.000000e+00 : f32
    %160 = vector.broadcast %cst_96 : f32 to vector<2x16xf32>
    %161 = arith.maximumf %159, %160 : vector<2x16xf32>
    %162 = arith.subf %156, %161 : vector<2x16xf32>
    %c0_97 = arith.constant 0 : index
    %c0_98 = arith.constant 0 : index
    %163 = vector.load %arg17[%c0_97, %c0_98] : memref<16x128xf32, #tpu.memory_space<vmem>>, vector<16x128xf32>
    %cst_99 = arith.constant dense<0.000000e+00> : vector<2x128xf32>
    %164 = tpu.matmul %162, %163, %cst_99 {dimension_numbers = #tpu.dot_dimension_numbers<[1], [0], [0], [1], [0, 0, 1, 1], [], []>} : vector<2x16xf32>, vector<16x128xf32>, vector<2x128xf32> -> vector<2x128xf32>
    %c0_100 = arith.constant 0 : index
    %c0_101 = arith.constant 0 : index
    %165 = vector.load %arg16[%c0_100, %c0_101] : memref<16x2xf32, #tpu.memory_space<vmem>>, vector<16x2xf32>
    %cst_102 = arith.constant dense<0.000000e+00> : vector<16x128xf32>
    %166 = tpu.matmul %165, %164, %cst_102 {dimension_numbers = #tpu.dot_dimension_numbers<[1], [0], [0], [1], [0, 0, 1, 1], [], []>} : vector<16x2xf32>, vector<2x128xf32>, vector<16x128xf32> -> vector<16x128xf32>
    %167 = arith.addf %134, %166 : vector<16x128xf32>
    %c0_103 = arith.constant 0 : index
    %c0_104 = arith.constant 0 : index
    %168 = vector.load %arg19[%c0_103, %c0_104] : memref<16x128xf32, #tpu.memory_space<vmem>>, vector<16x128xf32>
    tpu.vector_store %arg19[%c0_103, %c0_104], %167 {strides = array<i32>} : memref<16x128xf32, #tpu.memory_space<vmem>>, vector<16x128xf32>,
    %c0_105 = arith.constant 0 : index
    %c0_106 = arith.constant 0 : index
    %169 = vector.load %arg19[%c0_105, %c0_106] : memref<16x128xf32, #tpu.memory_space<vmem>>, vector<16x16xf32>
    %c0_107 = arith.constant 0 : index
    %c0_108 = arith.constant 0 : index
    %c0_109 = arith.constant 0 : index
    %170 = vector.load %arg18[%c0_107, %c0_108, %c0_109] : memref<8x16x16xf32, #tpu.memory_space<vmem>>, vector<1x16x16xf32>
    %171 = vector.shape_cast %170 : vector<1x16x16xf32> to vector<16x16xf32>
    %172 = vector.shape_cast %169 : vector<16x16xf32> to vector<1x16x16xf32>
    tpu.vector_store %arg18[%c0_107, %c0_108, %c0_109], %172 {strides = array<i32>} : memref<8x16x16xf32, #tpu.memory_space<vmem>>, vector<1x16x16xf32>,
    %c0_110 = arith.constant 0 : index
    %c16_111 = arith.constant 16 : index
    %173 = vector.load %arg19[%c0_110, %c16_111] : memref<16x128xf32, #tpu.memory_space<vmem>>, vector<16x16xf32>
    %c1_112 = arith.constant 1 : index
    %c0_113 = arith.constant 0 : index
    %c0_114 = arith.constant 0 : index
    %174 = vector.load %arg18[%c1_112, %c0_113, %c0_114] : memref<8x16x16xf32, #tpu.memory_space<vmem>>, vector<1x16x16xf32>
    %175 = vector.shape_cast %174 : vector<1x16x16xf32> to vector<16x16xf32>
    %176 = vector.shape_cast %173 : vector<16x16xf32> to vector<1x16x16xf32>
    tpu.vector_store %arg18[%c1_112, %c0_113, %c0_114], %176 {strides = array<i32>} : memref<8x16x16xf32, #tpu.memory_space<vmem>>, vector<1x16x16xf32>,
    %c0_115 = arith.constant 0 : index
    %c32_116 = arith.constant 32 : index
    %177 = vector.load %arg19[%c0_115, %c32_116] : memref<16x128xf32, #tpu.memory_space<vmem>>, vector<16x16xf32>
    %c2_117 = arith.constant 2 : index
    %c0_118 = arith.constant 0 : index
    %c0_119 = arith.constant 0 : index
    %178 = vector.load %arg18[%c2_117, %c0_118, %c0_119] : memref<8x16x16xf32, #tpu.memory_space<vmem>>, vector<1x16x16xf32>
    %179 = vector.shape_cast %178 : vector<1x16x16xf32> to vector<16x16xf32>
    %180 = vector.shape_cast %177 : vector<16x16xf32> to vector<1x16x16xf32>
    tpu.vector_store %arg18[%c2_117, %c0_118, %c0_119], %180 {strides = array<i32>} : memref<8x16x16xf32, #tpu.memory_space<vmem>>, vector<1x16x16xf32>,
    %c0_120 = arith.constant 0 : index
    %c48_121 = arith.constant 48 : index
    %181 = vector.load %arg19[%c0_120, %c48_121] : memref<16x128xf32, #tpu.memory_space<vmem>>, vector<16x16xf32>
    %c3_122 = arith.constant 3 : index
    %c0_123 = arith.constant 0 : index
    %c0_124 = arith.constant 0 : index
    %182 = vector.load %arg18[%c3_122, %c0_123, %c0_124] : memref<8x16x16xf32, #tpu.memory_space<vmem>>, vector<1x16x16xf32>
    %183 = vector.shape_cast %182 : vector<1x16x16xf32> to vector<16x16xf32>
    %184 = vector.shape_cast %181 : vector<16x16xf32> to vector<1x16x16xf32>
    tpu.vector_store %arg18[%c3_122, %c0_123, %c0_124], %184 {strides = array<i32>} : memref<8x16x16xf32, #tpu.memory_space<vmem>>, vector<1x16x16xf32>,
    %c0_125 = arith.constant 0 : index
    %c64_126 = arith.constant 64 : index
    %185 = vector.load %arg19[%c0_125, %c64_126] : memref<16x128xf32, #tpu.memory_space<vmem>>, vector<16x16xf32>
    %c4_127 = arith.constant 4 : index
    %c0_128 = arith.constant 0 : index
    %c0_129 = arith.constant 0 : index
    %186 = vector.load %arg18[%c4_127, %c0_128, %c0_129] : memref<8x16x16xf32, #tpu.memory_space<vmem>>, vector<1x16x16xf32>
    %187 = vector.shape_cast %186 : vector<1x16x16xf32> to vector<16x16xf32>
    %188 = vector.shape_cast %185 : vector<16x16xf32> to vector<1x16x16xf32>
    tpu.vector_store %arg18[%c4_127, %c0_128, %c0_129], %188 {strides = array<i32>} : memref<8x16x16xf32, #tpu.memory_space<vmem>>, vector<1x16x16xf32>,
    %c0_130 = arith.constant 0 : index
    %c80_131 = arith.constant 80 : index
    %189 = vector.load %arg19[%c0_130, %c80_131] : memref<16x128xf32, #tpu.memory_space<vmem>>, vector<16x16xf32>
    %c5_132 = arith.constant 5 : index
    %c0_133 = arith.constant 0 : index
    %c0_134 = arith.constant 0 : index
    %190 = vector.load %arg18[%c5_132, %c0_133, %c0_134] : memref<8x16x16xf32, #tpu.memory_space<vmem>>, vector<1x16x16xf32>
    %191 = vector.shape_cast %190 : vector<1x16x16xf32> to vector<16x16xf32>
    %192 = vector.shape_cast %189 : vector<16x16xf32> to vector<1x16x16xf32>
    tpu.vector_store %arg18[%c5_132, %c0_133, %c0_134], %192 {strides = array<i32>} : memref<8x16x16xf32, #tpu.memory_space<vmem>>, vector<1x16x16xf32>,
    %c0_135 = arith.constant 0 : index
    %c96_136 = arith.constant 96 : index
    %193 = vector.load %arg19[%c0_135, %c96_136] : memref<16x128xf32, #tpu.memory_space<vmem>>, vector<16x16xf32>
    %c6_137 = arith.constant 6 : index
    %c0_138 = arith.constant 0 : index
    %c0_139 = arith.constant 0 : index
    %194 = vector.load %arg18[%c6_137, %c0_138, %c0_139] : memref<8x16x16xf32, #tpu.memory_space<vmem>>, vector<1x16x16xf32>
    %195 = vector.shape_cast %194 : vector<1x16x16xf32> to vector<16x16xf32>
    %196 = vector.shape_cast %193 : vector<16x16xf32> to vector<1x16x16xf32>
    tpu.vector_store %arg18[%c6_137, %c0_138, %c0_139], %196 {strides = array<i32>} : memref<8x16x16xf32, #tpu.memory_space<vmem>>, vector<1x16x16xf32>,
    %c0_140 = arith.constant 0 : index
    %c112_141 = arith.constant 112 : index
    %197 = vector.load %arg19[%c0_140, %c112_141] : memref<16x128xf32, #tpu.memory_space<vmem>>, vector<16x16xf32>
    %c7_142 = arith.constant 7 : index
    %c0_143 = arith.constant 0 : index
    %c0_144 = arith.constant 0 : index
    %198 = vector.load %arg18[%c7_142, %c0_143, %c0_144] : memref<8x16x16xf32, #tpu.memory_space<vmem>>, vector<1x16x16xf32>
    %199 = vector.shape_cast %198 : vector<1x16x16xf32> to vector<16x16xf32>
    %200 = vector.shape_cast %197 : vector<16x16xf32> to vector<1x16x16xf32>
    tpu.vector_store %arg18[%c7_142, %c0_143, %c0_144], %200 {strides = array<i32>} : memref<8x16x16xf32, #tpu.memory_space<vmem>>, vector<1x16x16xf32>,
    return
  }
}

</mosaic_0001>

<llo_original>
// kernel: haar_soft_threshold_2d.1
$region0: #{haar_soft_threshold_2d.1}
  #allocation0 [shape = 'u32[]', space=smem, size = 0x4, offset = 0x4, fixed_abs, tag = 'smem constant byte address 0x4 - core index']
  #allocation1 [shape = 'u32[144,128]{1,0:T(1,128)}', space=vmem, size = 0x12000, scoped, tag = 'internal scratch']
  #allocation2 [shape = 'f32[16,128]{1,0:T(8,128)}', space=vmem, size = 0x2000, scoped, tag = 'scratch operand']
  %s0 = inlined_call_operand.hbm [shape: f32[8,16,16], index: 0, kind: input, shape index: {}]
  %s1 = inlined_call_operand.hbm [shape: f32[12], index: 1, kind: input, shape index: {}]
  %s2 = inlined_call_operand.hbm [shape: f32[16,16], index: 2, kind: input, shape index: {}]
  %s3 = inlined_call_operand.hbm [shape: f32[128,128], index: 3, kind: input, shape index: {}]
  %s4 = inlined_call_operand.hbm [shape: f32[16,16], index: 4, kind: input, shape index: {}]
  %s5 = inlined_call_operand.hbm [shape: f32[128,128], index: 5, kind: input, shape index: {}]
  %s6 = inlined_call_operand.hbm [shape: f32[8,16], index: 6, kind: input, shape index: {}]
  %s7 = inlined_call_operand.hbm [shape: f32[128,64], index: 7, kind: input, shape index: {}]
  %s8 = inlined_call_operand.hbm [shape: f32[16,8], index: 8, kind: input, shape index: {}]
  %s9 = inlined_call_operand.hbm [shape: f32[64,128], index: 9, kind: input, shape index: {}]
  %s10 = inlined_call_operand.hbm [shape: f32[4,16], index: 10, kind: input, shape index: {}]
  %s11 = inlined_call_operand.hbm [shape: f32[128,32], index: 11, kind: input, shape index: {}]
  %s12 = inlined_call_operand.hbm [shape: f32[16,4], index: 12, kind: input, shape index: {}]
  %s13 = inlined_call_operand.vmem [shape: f32[32,128], index: 13, kind: input, shape index: {}]
  %s14 = inlined_call_operand.hbm [shape: f32[2,16], index: 14, kind: input, shape index: {}]
  %s15 = inlined_call_operand.hbm [shape: f32[128,16], index: 15, kind: input, shape index: {}]
  %s16 = inlined_call_operand.vmem [shape: f32[16,2], index: 16, kind: input, shape index: {}]
  %s17 = inlined_call_operand.vmem [shape: f32[16,128], index: 17, kind: input, shape index: {}]
  %s18 = inlined_call_operand.hbm [shape: f32[8,16,16], index: 18, kind: output, shape index: {}]
  %s19 = sld [smem:[#allocation0]]
  $region142: #{haar_soft_threshold_2d.1} parent=0
    _
  %s21 = ssub.s32 1, %s19
  %s22 = scalar_select 0, %s21, %s19
  $region1: #{haar_soft_threshold_2d.1} parent=0
    #allocation3 [shape = 'u8[65536]{0}', space=vmem, size = 0x10000, scoped, tag = 'input window, operand 0, single buffered']
    #allocation4 [shape = 's32[1]{0}', space=sflag, size = 0x4, scoped, tag = 'scoped memory for haar_soft_threshold_2d.1']
    #allocation5 [shape = 's32[1]{0}', space=sflag, size = 0x4, scoped, tag = 'scoped memory for haar_soft_threshold_2d.1']
    #allocation6 [shape = 's32[1]{0}', space=sflag, size = 0x4, scoped, tag = 'scoped memory for haar_soft_threshold_2d.1']
    #allocation7 [shape = 'u8[512]{0}', space=smem, size = 0x200, scoped, tag = 'input window, operand 1, single buffered']
    #allocation8 [shape = 'u8[8192]{0}', space=vmem, size = 0x2000, scoped, tag = 'input window, operand 2, single buffered']
    #allocation9 [shape = 's32[1]{0}', space=sflag, size = 0x4, scoped, tag = 'scoped memory for haar_soft_threshold_2d.1']
    #allocation10 [shape = 'u8[65536]{0}', space=vmem, size = 0x10000, scoped, tag = 'input window, operand 3, single buffered']
    #allocation11 [shape = 'u8[8192]{0}', space=vmem, size = 0x2000, scoped, tag = 'input window, operand 4, single buffered']
    #allocation12 [shape = 's32[1]{0}', space=sflag, size = 0x4, scoped, tag = 'scoped memory for haar_soft_threshold_2d.1']
    #allocation13 [shape = 'u8[65536]{0}', space=vmem, size = 0x10000, scoped, tag = 'input window, operand 5, single buffered']
    #allocation14 [shape = 'u8[4096]{0}', space=vmem, size = 0x1000, scoped, tag = 'input window, operand 6, single buffered']
    #allocation15 [shape = 's32[1]{0}', space=sflag, size = 0x4, scoped, tag = 'scoped memory for haar_soft_threshold_2d.1']
    #allocation16 [shape = 'u8[65536]{0}', space=vmem, size = 0x10000, scoped, tag = 'input window, operand 7, single buffered']
    #allocation17 [shape = 'u8[8192]{0}', space=vmem, size = 0x2000, scoped, tag = 'input window, operand 8, single buffered']
    #allocation18 [shape = 's32[1]{0}', space=sflag, size = 0x4, scoped, tag = 'scoped memory for haar_soft_threshold_2d.1']
    #allocation19 [shape = 'u8[32768]{0}', space=vmem, size = 0x8000, scoped, tag = 'input window, operand 9, single buffered']
    #allocation20 [shape = 'u8[2048]{0}', space=vmem, size = 0x800, scoped, tag = 'input window, operand 10, single buffered']
    #allocation21 [shape = 's32[1]{0}', space=sflag, size = 0x4, scoped, tag = 'scoped memory for haar_soft_threshold_2d.1']
    #allocation22 [shape = 'u8[65536]{0}', space=vmem, size = 0x10000, scoped, tag = 'input window, operand 11, single buffered']
    #allocation23 [shape = 'u8[8192]{0}', space=vmem, size = 0x2000, scoped, tag = 'input window, operand 12, single buffered']
    #allocation24 [shape = 's32[1]{0}', space=sflag, size = 0x4, scoped, tag = 'scoped memory for haar_soft_threshold_2d.1']
    #allocation25 [shape = 'u8[1024]{0}', space=vmem, size = 0x400, scoped, tag = 'input window, operand 14, single buffered']
    #allocation26 [shape = 'u8[65536]{0}', space=vmem, size = 0x10000, scoped, tag = 'input window, operand 15, single buffered']
    #allocation27 [shape = 's32[1]{0}', space=sflag, size = 0x4, scoped, tag = 'scoped memory for haar_soft_threshold_2d.1']
    #allocation28 [shape = 'u8[65536]{0}', space=vmem, size = 0x10000, scoped, tag = 'output window, operand 0, single buffered']
    %23 = vsyncpa [#allocation4], 0
    %24 = vsyncpa [#allocation6], 0
    %25 = vsyncpa [#allocation9], 0
    %26 = vsyncpa [#allocation12], 0
    %27 = vsyncpa [#allocation15], 0
    %28 = vsyncpa [#allocation18], 0
    %29 = vsyncpa [#allocation21], 0
    %30 = vsyncpa [#allocation24], 0
    %31 = vsyncpa [#allocation27], 0
    %32 = vsyncpa [#allocation5], 0
    // Predicated region
    $region2: #{haar_soft_threshold_2d.1} parent=1 // pred_check
      _
    $region3: #{haar_soft_threshold_2d.1} parent=1 // pred_check_branch
      %34 = sbr.rel (0) target = $region5
    $region4: #{haar_soft_threshold_2d.1} parent=1 // pred_region
      %s36 = ssub.s32 2048, 2048
      %37 = vsyncadd [#allocation4], %s36
      %s38 = sshll.u32 [#allocation3], 4
      %s39 = int_to_ptr.vmem [resolvable:$true] %s38
      %44 = dma.hbm_to_vmem [thread:$0]  %s0, 2048, %s39, [#allocation4], 128, 128, 8
    $region5: #{haar_soft_threshold_2d.1} parent=1 // pred_fallthru
      _
    // Predicated region
    $region6: #{haar_soft_threshold_2d.1} parent=1 // pred_check
      _
    $region7: #{haar_soft_threshold_2d.1} parent=1 // pred_check_branch
      %46 = sbr.rel (0) target = $region9
    $region8: #{haar_soft_threshold_2d.1} parent=1 // pred_region
      %s48 = ssub.s32 16, 16
      %49 = vsyncadd [#allocation6], %s48
      %52 = dma.hbm_to_smem %s1, 16, [#allocation7], [#allocation6]
    $region9: #{haar_soft_threshold_2d.1} parent=1 // pred_fallthru
      _
    // Predicated region
    $region10: #{haar_soft_threshold_2d.1} parent=1 // pred_check
      _
    $region11: #{haar_soft_threshold_2d.1} parent=1 // pred_check_branch
      %54 = sbr.rel (0) target = $region13
    $region12: #{haar_soft_threshold_2d.1} parent=1 // pred_region
      %s56 = ssub.s32 256, 256
      %57 = vsyncadd [#allocation9], %s56
      %s58 = sshll.u32 [#allocation8], 4
      %s59 = int_to_ptr.vmem [resolvable:$true] %s58
      %64 = dma.hbm_to_vmem [thread:$0]  %s2, 256, %s59, [#allocation9], 128, 128, 8
    $region13: #{haar_soft_threshold_2d.1} parent=1 // pred_fallthru
      _
    // Predicated region
    $region14: #{haar_soft_threshold_2d.1} parent=1 // pred_check
      _
    $region15: #{haar_soft_threshold_2d.1} parent=1 // pred_check_branch
      %66 = sbr.rel (0) target = $region17
    $region16: #{haar_soft_threshold_2d.1} parent=1 // pred_region
      %s68 = ssub.s32 2048, 2048
      %69 = vsyncadd [#allocation9], %s68
      %s70 = sshll.u32 [#allocation10], 4
      %s71 = int_to_ptr.vmem [resolvable:$true] %s70
      %76 = dma.hbm_to_vmem [thread:$0]  %s3, 2048, %s71, [#allocation9], 128, 128, 8
    $region17: #{haar_soft_threshold_2d.1} parent=1 // pred_fallthru
      _
    // Predicated region
    $region18: #{haar_soft_threshold_2d.1} parent=1 // pred_check
      _
    $region19: #{haar_soft_threshold_2d.1} parent=1 // pred_check_branch
      %78 = sbr.rel (0) target = $region21
    $region20: #{haar_soft_threshold_2d.1} parent=1 // pred_region
      %s80 = ssub.s32 256, 256
      %81 = vsyncadd [#allocation12], %s80
      %s82 = sshll.u32 [#allocation11], 4
      %s83 = int_to_ptr.vmem [resolvable:$true] %s82
      %88 = dma.hbm_to_vmem [thread:$0]  %s4, 256, %s83, [#allocation12], 128, 128, 8
    $region21: #{haar_soft_threshold_2d.1} parent=1 // pred_fallthru
      _
    // Predicated region
    $region22: #{haar_soft_threshold_2d.1} parent=1 // pred_check
      _
    $region23: #{haar_soft_threshold_2d.1} parent=1 // pred_check_branch
      %90 = sbr.rel (0) target = $region25
    $region24: #{haar_soft_threshold_2d.1} parent=1 // pred_region
      %s92 = ssub.s32 2048, 2048
      %93 = vsyncadd [#allocation12], %s92
      %s94 = sshll.u32 [#allocation13], 4
      %s95 = int_to_ptr.vmem [resolvable:$true] %s94
      %100 = dma.hbm_to_vmem [thread:$0]  %s5, 2048, %s95, [#allocation12], 128, 128, 8
    $region25: #{haar_soft_threshold_2d.1} parent=1 // pred_fallthru
      _
    // Predicated region
    $region26: #{haar_soft_threshold_2d.1} parent=1 // pred_check
      _
    $region27: #{haar_soft_threshold_2d.1} parent=1 // pred_check_branch
      %102 = sbr.rel (0) target = $region29
    $region28: #{haar_soft_threshold_2d.1} parent=1 // pred_region
      %s104 = ssub.s32 128, 128
      %105 = vsyncadd [#allocation15], %s104
      %s107 = sshll.u32 [#allocation14], 4
      %s108 = int_to_ptr.vmem [resolvable:$true] %s107
      %110 = dma.hbm_to_vmem [thread:$0]  %s6, 128, %s108, [#allocation15]
    $region29: #{haar_soft_threshold_2d.1} parent=1 // pred_fallthru
      _
    // Predicated region
    $region30: #{haar_soft_threshold_2d.1} parent=1 // pred_check
      _
    $region31: #{haar_soft_threshold_2d.1} parent=1 // pred_check_branch
      %112 = sbr.rel (0) target = $region33
    $region32: #{haar_soft_threshold_2d.1} parent=1 // pred_region
      %s114 = ssub.s32 2048, 2048
      %115 = vsyncadd [#allocation15], %s114
      %s116 = sshll.u32 [#allocation16], 4
      %s117 = int_to_ptr.vmem [resolvable:$true] %s116
      %122 = dma.hbm_to_vmem [thread:$0]  %s7, 2048, %s117, [#allocation15], 128, 128, 8
    $region33: #{haar_soft_threshold_2d.1} parent=1 // pred_fallthru
      _
    // Predicated region
    $region34: #{haar_soft_threshold_2d.1} parent=1 // pred_check
      _
    $region35: #{haar_soft_threshold_2d.1} parent=1 // pred_check_branch
      %124 = sbr.rel (0) target = $region37
    $region36: #{haar_soft_threshold_2d.1} parent=1 // pred_region
      %s126 = ssub.s32 256, 256
      %127 = vsyncadd [#allocation18], %s126
      %s128 = sshll.u32 [#allocation17], 4
      %s129 = int_to_ptr.vmem [resolvable:$true] %s128
      %134 = dma.hbm_to_vmem [thread:$0]  %s8, 256, %s129, [#allocation18], 128, 128, 8
    $region37: #{haar_soft_threshold_2d.1} parent=1 // pred_fallthru
      _
    // Predicated region
    $region38: #{haar_soft_threshold_2d.1} parent=1 // pred_check
      _
    $region39: #{haar_soft_threshold_2d.1} parent=1 // pred_check_branch
      %136 = sbr.rel (0) target = $region41
    $region40: #{haar_soft_threshold_2d.1} parent=1 // pred_region
      %s138 = ssub.s32 1024, 1024
      %139 = vsyncadd [#allocation18], %s138
      %s140 = sshll.u32 [#allocation19], 4
      %s141 = int_to_ptr.vmem [resolvable:$true] %s140
      %146 = dma.hbm_to_vmem [thread:$0]  %s9, 1024, %s141, [#allocation18], 128, 128, 8
    $region41: #{haar_soft_threshold_2d.1} parent=1 // pred_fallthru
      _
    // Predicated region
    $region42: #{haar_soft_threshold_2d.1} parent=1 // pred_check
      _
    $region43: #{haar_soft_threshold_2d.1} parent=1 // pred_check_branch
      %148 = sbr.rel (0) target = $region45
    $region44: #{haar_soft_threshold_2d.1} parent=1 // pred_region
      %s150 = ssub.s32 64, 64
      %151 = vsyncadd [#allocation21], %s150
      %s153 = sshll.u32 [#allocation20], 4
      %s154 = int_to_ptr.vmem [resolvable:$true] %s153
      %156 = dma.hbm_to_vmem [thread:$0]  %s10, 64, %s154, [#allocation21]
    $region45: #{haar_soft_threshold_2d.1} parent=1 // pred_fallthru
      _
    // Predicated region
    $region46: #{haar_soft_threshold_2d.1} parent=1 // pred_check
      _
    $region47: #{haar_soft_threshold_2d.1} parent=1 // pred_check_branch
      %158 = sbr.rel (0) target = $region49
    $region48: #{haar_soft_threshold_2d.1} parent=1 // pred_region
      %s160 = ssub.s32 2048, 2048
      %161 = vsyncadd [#allocation21], %s160
      %s162 = sshll.u32 [#allocation22], 4
      %s163 = int_to_ptr.vmem [resolvable:$true] %s162
      %168 = dma.hbm_to_vmem [thread:$0]  %s11, 2048, %s163, [#allocation21], 128, 128, 8
    $region49: #{haar_soft_threshold_2d.1} parent=1 // pred_fallthru
      _
    // Predicated region
    $region50: #{haar_soft_threshold_2d.1} parent=1 // pred_check
      _
    $region51: #{haar_soft_threshold_2d.1} parent=1 // pred_check_branch
      %170 = sbr.rel (0) target = $region53
    $region52: #{haar_soft_threshold_2d.1} parent=1 // pred_region
      %s172 = ssub.s32 256, 256
      %173 = vsyncadd [#allocation24], %s172
      %s174 = sshll.u32 [#allocation23], 4
      %s175 = int_to_ptr.vmem [resolvable:$true] %s174
      %180 = dma.hbm_to_vmem [thread:$0]  %s12, 256, %s175, [#allocation24], 128, 128, 8
    $region53: #{haar_soft_threshold_2d.1} parent=1 // pred_fallthru
      _
    // Predicated region
    $region54: #{haar_soft_threshold_2d.1} parent=1 // pred_check
      _
    $region55: #{haar_soft_threshold_2d.1} parent=1 // pred_check_branch
      %182 = sbr.rel (0) target = $region57
    $region56: #{haar_soft_threshold_2d.1} parent=1 // pred_region
      _
    $region57: #{haar_soft_threshold_2d.1} parent=1 // pred_fallthru
      _
    // Predicated region
    $region58: #{haar_soft_threshold_2d.1} parent=1 // pred_check
      _
    $region59: #{haar_soft_threshold_2d.1} parent=1 // pred_check_branch
      %184 = sbr.rel (0) target = $region61
    $region60: #{haar_soft_threshold_2d.1} parent=1 // pred_region
      %s186 = ssub.s32 32, 32
      %187 = vsyncadd [#allocation24], %s186
      %s189 = sshll.u32 [#allocation25], 4
      %s190 = int_to_ptr.vmem [resolvable:$true] %s189
      %192 = dma.hbm_to_vmem [thread:$0]  %s14, 32, %s190, [#allocation24]
    $region61: #{haar_soft_threshold_2d.1} parent=1 // pred_fallthru
      _
    // Predicated region
    $region62: #{haar_soft_threshold_2d.1} parent=1 // pred_check
      _
    $region63: #{haar_soft_threshold_2d.1} parent=1 // pred_check_branch
      %194 = sbr.rel (0) target = $region65
    $region64: #{haar_soft_threshold_2d.1} parent=1 // pred_region
      %s196 = ssub.s32 2048, 2048
      %197 = vsyncadd [#allocation27], %s196
      %s198 = sshll.u32 [#allocation26], 4
      %s199 = int_to_ptr.vmem [resolvable:$true] %s198
      %204 = dma.hbm_to_vmem [thread:$0]  %s15, 2048, %s199, [#allocation27], 128, 128, 8
    $region65: #{haar_soft_threshold_2d.1} parent=1 // pred_fallthru
      _
    // Predicated region
    $region66: #{haar_soft_threshold_2d.1} parent=1 // pred_check
      _
    $region67: #{haar_soft_threshold_2d.1} parent=1 // pred_check_branch
      %206 = sbr.rel (0) target = $region69
    $region68: #{haar_soft_threshold_2d.1} parent=1 // pred_region
      _
    $region69: #{haar_soft_threshold_2d.1} parent=1 // pred_fallthru
      _
    // Predicated region
    $region70: #{haar_soft_threshold_2d.1} parent=1 // pred_check
      _
    $region71: #{haar_soft_threshold_2d.1} parent=1 // pred_check_branch
      %208 = sbr.rel (0) target = $region73
    $region72: #{haar_soft_threshold_2d.1} parent=1 // pred_region
      _
    $region73: #{haar_soft_threshold_2d.1} parent=1 // pred_fallthru
      _
    // Predicated region
    $region74: #{haar_soft_threshold_2d.1} parent=1 // pred_check
      _
    $region75: #{haar_soft_threshold_2d.1} parent=1 // pred_check_branch
      %210 = sbr.rel (0) target = $region77
    $region76: #{haar_soft_threshold_2d.1} parent=1 // pred_region
      %211 = dma.done [#allocation4], 2048
    $region77: #{haar_soft_threshold_2d.1} parent=1 // pred_fallthru
      _
    // Predicated region
    $region78: #{haar_soft_threshold_2d.1} parent=1 // pred_check
      _
    $region79: #{haar_soft_threshold_2d.1} parent=1 // pred_check_branch
      %213 = sbr.rel (0) target = $region81
    $region80: #{haar_soft_threshold_2d.1} parent=1 // pred_region
      %214 = dma.done [#allocation6], 16
    $region81: #{haar_soft_threshold_2d.1} parent=1 // pred_fallthru
      _
    // Predicated region
    $region82: #{haar_soft_threshold_2d.1} parent=1 // pred_check
      _
    $region83: #{haar_soft_threshold_2d.1} parent=1 // pred_check_branch
      %216 = sbr.rel (0) target = $region85
    $region84: #{haar_soft_threshold_2d.1} parent=1 // pred_region
      %217 = dma.done [#allocation9], 256
    $region85: #{haar_soft_threshold_2d.1} parent=1 // pred_fallthru
      _
    // Predicated region
    $region86: #{haar_soft_threshold_2d.1} parent=1 // pred_check
      _
    $region87: #{haar_soft_threshold_2d.1} parent=1 // pred_check_branch
      %219 = sbr.rel (0) target = $region89
    $region88: #{haar_soft_threshold_2d.1} parent=1 // pred_region
      %220 = dma.done [#allocation9], 2048
    $region89: #{haar_soft_threshold_2d.1} parent=1 // pred_fallthru
      _
    // Predicated region
    $region90: #{haar_soft_threshold_2d.1} parent=1 // pred_check
      _
    $region91: #{haar_soft_threshold_2d.1} parent=1 // pred_check_branch
      %222 = sbr.rel (0) target = $region93
    $region92: #{haar_soft_threshold_2d.1} parent=1 // pred_region
      %223 = dma.done [#allocation12], 256
    $region93: #{haar_soft_threshold_2d.1} parent=1 // pred_fallthru
      _
    // Predicated region
    $region94: #{haar_soft_threshold_2d.1} parent=1 // pred_check
      _
    $region95: #{haar_soft_threshold_2d.1} parent=1 // pred_check_branch
      %225 = sbr.rel (0) target = $region97
    $region96: #{haar_soft_threshold_2d.1} parent=1 // pred_region
      %226 = dma.done [#allocation12], 2048
    $region97: #{haar_soft_threshold_2d.1} parent=1 // pred_fallthru
      _
    // Predicated region
    $region98: #{haar_soft_threshold_2d.1} parent=1 // pred_check
      _
    $region99: #{haar_soft_threshold_2d.1} parent=1 // pred_check_branch
      %228 = sbr.rel (0) target = $region101
    $region100: #{haar_soft_threshold_2d.1} parent=1 // pred_region
      %229 = dma.done [#allocation15], 128
    $region101: #{haar_soft_threshold_2d.1} parent=1 // pred_fallthru
      _
    // Predicated region
    $region102: #{haar_soft_threshold_2d.1} parent=1 // pred_check
      _
    $region103: #{haar_soft_threshold_2d.1} parent=1 // pred_check_branch
      %231 = sbr.rel (0) target = $region105
    $region104: #{haar_soft_threshold_2d.1} parent=1 // pred_region
      %232 = dma.done [#allocation15], 2048
    $region105: #{haar_soft_threshold_2d.1} parent=1 // pred_fallthru
      _
    // Predicated region
    $region106: #{haar_soft_threshold_2d.1} parent=1 // pred_check
      _
    $region107: #{haar_soft_threshold_2d.1} parent=1 // pred_check_branch
      %234 = sbr.rel (0) target = $region109
    $region108: #{haar_soft_threshold_2d.1} parent=1 // pred_region
      %235 = dma.done [#allocation18], 256
    $region109: #{haar_soft_threshold_2d.1} parent=1 // pred_fallthru
      _
    // Predicated region
    $region110: #{haar_soft_threshold_2d.1} parent=1 // pred_check
      _
    $region111: #{haar_soft_threshold_2d.1} parent=1 // pred_check_branch
      %237 = sbr.rel (0) target = $region113
    $region112: #{haar_soft_threshold_2d.1} parent=1 // pred_region
      %238 = dma.done [#allocation18], 1024
    $region113: #{haar_soft_threshold_2d.1} parent=1 // pred_fallthru
      _
    // Predicated region
    $region114: #{haar_soft_threshold_2d.1} parent=1 // pred_check
      _
    $region115: #{haar_soft_threshold_2d.1} parent=1 // pred_check_branch
      %240 = sbr.rel (0) target = $region117
    $region116: #{haar_soft_threshold_2d.1} parent=1 // pred_region
      %241 = dma.done [#allocation21], 64
    $region117: #{haar_soft_threshold_2d.1} parent=1 // pred_fallthru
      _
    // Predicated region
    $region118: #{haar_soft_threshold_2d.1} parent=1 // pred_check
      _
    $region119: #{haar_soft_threshold_2d.1} parent=1 // pred_check_branch
      %243 = sbr.rel (0) target = $region121
    $region120: #{haar_soft_threshold_2d.1} parent=1 // pred_region
      %244 = dma.done [#allocation21], 2048
    $region121: #{haar_soft_threshold_2d.1} parent=1 // pred_fallthru
      _
    // Predicated region
    $region122: #{haar_soft_threshold_2d.1} parent=1 // pred_check
      _
    $region123: #{haar_soft_threshold_2d.1} parent=1 // pred_check_branch
      %246 = sbr.rel (0) target = $region125
    $region124: #{haar_soft_threshold_2d.1} parent=1 // pred_region
      %247 = dma.done [#allocation24], 256
    $region125: #{haar_soft_threshold_2d.1} parent=1 // pred_fallthru
      _
    // Predicated region
    $region126: #{haar_soft_threshold_2d.1} parent=1 // pred_check
      _
    $region127: #{haar_soft_threshold_2d.1} parent=1 // pred_check_branch
      %249 = sbr.rel (0) target = $region129
    $region128: #{haar_soft_threshold_2d.1} parent=1 // pred_region
      %250 = dma.done [#allocation24], 32
    $region129: #{haar_soft_threshold_2d.1} parent=1 // pred_fallthru
      _
    // Predicated region
    $region130: #{haar_soft_threshold_2d.1} parent=1 // pred_check
      _
    $region131: #{haar_soft_threshold_2d.1} parent=1 // pred_check_branch
      %252 = sbr.rel (0) target = $region133
    $region132: #{haar_soft_threshold_2d.1} parent=1 // pred_region
      %253 = dma.done [#allocation27], 2048
    $region133: #{haar_soft_threshold_2d.1} parent=1 // pred_fallthru
      _
    %254 = sfence
    %v255 = vld [vmem:[#allocation3] sm:$0xff]
    %v256 = vld [vmem:[#allocation3 + $0x8] sm:$0xff]
    %vm257 = vcmask 130048
    %258 = vst.msk [vmem:[#allocation2] sm:$0xff] %vm257, %v255
    %259 = vst.msk [vmem:[#allocation2 + $0x8] sm:$0xff] %vm257, %v256
    %s260 = scalar_lea.vmem [#allocation3], 16
    %v261 = vld [vmem:[%s260] sm:$0xff]
    %v262 = vld [vmem:[%s260 + $0x8] sm:$0xff]
    %265 = vrot.lane.b32.xlu0 %v261, 16
    %v266 = vpop.permute.xlu0 %265
    %267 = vrot.lane.b32.xlu0 %v262, 16
    %v268 = vpop.permute.xlu0 %267
    %vm271 = vcmask 261248
    %272 = vst.msk [vmem:[#allocation2] sm:$0xff] %vm271, %v266
    %273 = vst.msk [vmem:[#allocation2 + $0x8] sm:$0xff] %vm271, %v268
    %s274 = scalar_lea.vmem [#allocation3], 32
    %v275 = vld [vmem:[%s274] sm:$0xff]
    %v276 = vld [vmem:[%s274 + $0x8] sm:$0xff]
    %279 = vrot.lane.b32.xlu0 %v275, 32
    %v280 = vpop.permute.xlu0 %279
    %281 = vrot.lane.b32.xlu0 %v276, 32
    %v282 = vpop.permute.xlu0 %281
    %vm285 = vcmask 392448
    %286 = vst.msk [vmem:[#allocation2] sm:$0xff] %vm285, %v280
    %287 = vst.msk [vmem:[#allocation2 + $0x8] sm:$0xff] %vm285, %v282
    %s288 = scalar_lea.vmem [#allocation3], 48
    %v289 = vld [vmem:[%s288] sm:$0xff]
    %v290 = vld [vmem:[%s288 + $0x8] sm:$0xff]
    %293 = vrot.lane.b32.xlu0 %v289, 48
    %v294 = vpop.permute.xlu0 %293
    %295 = vrot.lane.b32.xlu0 %v290, 48
    %v296 = vpop.permute.xlu0 %295
    %vm299 = vcmask 523648
    %300 = vst.msk [vmem:[#allocation2] sm:$0xff] %vm299, %v294
    %301 = vst.msk [vmem:[#allocation2 + $0x8] sm:$0xff] %vm299, %v296
    %s302 = scalar_lea.vmem [#allocation3], 64
    %v303 = vld [vmem:[%s302] sm:$0xff]
    %v304 = vld [vmem:[%s302 + $0x8] sm:$0xff]
    %307 = vrot.lane.b32.xlu0 %v303, 64
    %v308 = vpop.permute.xlu0 %307
    %309 = vrot.lane.b32.xlu0 %v304, 64
    %v310 = vpop.permute.xlu0 %309
    %vm313 = vcmask 654848
    %314 = vst.msk [vmem:[#allocation2] sm:$0xff] %vm313, %v308
    %315 = vst.msk [vmem:[#allocation2 + $0x8] sm:$0xff] %vm313, %v310
    %s316 = scalar_lea.vmem [#allocation3], 80
    %v317 = vld [vmem:[%s316] sm:$0xff]
    %v318 = vld [vmem:[%s316 + $0x8] sm:$0xff]
    %321 = vrot.lane.b32.xlu0 %v317, 80
    %v322 = vpop.permute.xlu0 %321
    %323 = vrot.lane.b32.xlu0 %v318, 80
    %v324 = vpop.permute.xlu0 %323
    %vm327 = vcmask 786048
    %328 = vst.msk [vmem:[#allocation2] sm:$0xff] %vm327, %v322
    %329 = vst.msk [vmem:[#allocation2 + $0x8] sm:$0xff] %vm327, %v324
    %s330 = scalar_lea.vmem [#allocation3], 96
    %v331 = vld [vmem:[%s330] sm:$0xff]
    %v332 = vld [vmem:[%s330 + $0x8] sm:$0xff]
    %335 = vrot.lane.b32.xlu0 %v331, 96
    %v336 = vpop.permute.xlu0 %335
    %337 = vrot.lane.b32.xlu0 %v332, 96
    %v338 = vpop.permute.xlu0 %337
    %vm341 = vcmask 917248
    %342 = vst.msk [vmem:[#allocation2] sm:$0xff] %vm341, %v336
    %343 = vst.msk [vmem:[#allocation2 + $0x8] sm:$0xff] %vm341, %v338
    %s344 = scalar_lea.vmem [#allocation3], 112
    %v345 = vld [vmem:[%s344] sm:$0xff]
    %v346 = vld [vmem:[%s344 + $0x8] sm:$0xff]
    %349 = vrot.lane.b32.xlu0 %v345, 112
    %v350 = vpop.permute.xlu0 %349
    %351 = vrot.lane.b32.xlu0 %v346, 112
    %v352 = vpop.permute.xlu0 %351
    %vm355 = vcmask 1048448
    %356 = vst.msk [vmem:[#allocation2] sm:$0xff] %vm355, %v350
    %357 = vst.msk [vmem:[#allocation2 + $0x8] sm:$0xff] %vm355, %v352
    %v358 = vld [vmem:[#allocation2] sm:$0xff]
    %v359 = vld [vmem:[#allocation2 + $0x8] sm:$0xff]
    %s360 = sld [smem:[#allocation7]]
    %s361 = sld [smem:[#allocation7 + $0x1]]
    %s362 = sld [smem:[#allocation7 + $0x2]]
    %s363 = sld [smem:[#allocation7 + $0x3]]
    %s364 = sld [smem:[#allocation7 + $0x4]]
    %s365 = sld [smem:[#allocation7 + $0x5]]
    %s366 = sld [smem:[#allocation7 + $0x6]]
    %s367 = sld [smem:[#allocation7 + $0x7]]
    %s368 = sld [smem:[#allocation7 + $0x8]]
    %s369 = sld [smem:[#allocation7 + $0x9]]
    %s370 = sld [smem:[#allocation7 + $0xa]]
    %s371 = sld [smem:[#allocation7 + $0xb]]
    %v372 = vld [vmem:[#allocation8] sm:$0xff]
    %v373 = vld [vmem:[#allocation8 + $0x8] sm:$0xff]
    %v375 = vsel %vm257, %v372, 0
    %v378 = vsel %vm257, %v373, 0
    %380 = vmatprep.subr.mxu0 0.0
    %381 = vmatpush1.msra.mxu0 %v358
    %382 = vmatprep.subr.mxu0 0.0
    %383 = vmatpush1.msra.mxu0 %v359
    %384 = vmatprep.subr.mxu0 0.0
    %385 = vmatpush1.msra.mxu0 0.0
    %386 = vmatprep.subr.mxu0 0.0
    %387 = vmatpush1.msra.mxu0 0.0
    %388 = vmatprep.subr.mxu0 0.0
    %389 = vmatpush1.msra.mxu0 0.0
    %390 = vmatprep.subr.mxu0 0.0
    %391 = vmatpush1.msra.mxu0 0.0
    %392 = vmatprep.subr.mxu0 0.0
    %393 = vmatpush1.msra.mxu0 0.0
    %394 = vmatprep.subr.mxu0 0.0
    %395 = vmatpush1.msra.mxu0 0.0
    %396 = vmatprep.subr.mxu0 0.0
    %397 = vmatpush1.msra.mxu0 0.0
    %398 = vmatprep.subr.mxu0 0.0
    %399 = vmatpush1.msra.mxu0 0.0
    %400 = vmatprep.subr.mxu0 0.0
    %401 = vmatpush1.msra.mxu0 0.0
    %402 = vmatprep.subr.mxu0 0.0
    %403 = vmatpush1.msra.mxu0 0.0
    %404 = vmatprep.subr.mxu0 0.0
    %405 = vmatpush1.msra.mxu0 0.0
    %406 = vmatprep.subr.mxu0 0.0
    %407 = vmatpush1.msra.mxu0 0.0
    %408 = vmatprep.subr.mxu0 0.0
    %409 = vmatpush1.msra.mxu0 0.0
    %410 = vmatprep.subr.mxu0 0.0
    %411 = vmatpush1.msra.mxu0 0.0
    %412 = vmatprep.subr.mxu0 0.0
    %413 = vmatpush1.msra.mxu0 0.0
    %414 = vmatprep.subr.mxu0 0.0
    %415 = vmatpush1.msra.mxu0 0.0
    %416 = vmatprep.subr.mxu0 0.0
    %417 = vmatpush1.msra.mxu0 0.0
    %418 = vmatprep.subr.mxu0 0.0
    %419 = vmatpush1.msra.mxu0 0.0
    %420 = vmatprep.subr.mxu0 0.0
    %421 = vmatpush1.msra.mxu0 0.0
    %422 = vmatprep.subr.mxu0 0.0
    %423 = vmatpush1.msra.mxu0 0.0
    %424 = vmatprep.subr.mxu0 0.0
    %425 = vmatpush1.msra.mxu0 0.0
    %426 = vmatprep.subr.mxu0 0.0
    %427 = vmatpush1.msra.mxu0 0.0
    %428 = vmatprep.subr.mxu0 0.0
    %429 = vmatpush1.msra.mxu0 0.0
    %430 = vmatprep.subr.mxu0 0.0
    %431 = vmatpush1.msra.mxu0 0.0
    %432 = vmatprep.subr.mxu0 0.0
    %433 = vmatpush1.msra.mxu0 0.0
    %434 = vmatprep.subr.mxu0 0.0
    %435 = vmatpush1.msra.mxu0 0.0
    %436 = vmatprep.subr.mxu0 0.0
    %437 = vmatpush1.msra.mxu0 0.0
    %438 = vmatprep.subr.mxu0 0.0
    %439 = vmatpush1.msra.mxu0 0.0
    %440 = vmatprep.subr.mxu0 0.0
    %441 = vmatpush1.msra.mxu0 0.0
    %442 = vmatprep.subr.mxu0 0.0
    %443 = vmatpush1.msra.mxu0 0.0
    %444 = vmatprep.mubr.f32.mxu0 0.0
    %445 = vmatmul.mubr.f32.gmra.mrb[0].mxu0 %v375
    %v446 = vpop.f32.mrb[0].mxu0
    %v447 = vadd.f32 0.0, %v446
    %v448 = vpop.f32.mrb[0].mxu0
    %449 = vmatprep.mubr.f32.mxu0 0.0
    %450 = vmatmul.mubr.f32.gmra.mrb[0].mxu0 %v378
    %v451 = vpop.f32.mrb[0].mxu0
    %v452 = vadd.f32 0.0, %v451
    %v453 = vpop.f32.mrb[0].mxu0
    %454 = vdwg.mxu0
    %v455 = vld [vmem:[#allocation10] sm:$0xff]
    %v456 = vld [vmem:[#allocation10 + $0x8] sm:$0xff]
    %v457 = vld [vmem:[#allocation10 + $0x10] sm:$0xff]
    %v458 = vld [vmem:[#allocation10 + $0x18] sm:$0xff]
    %v459 = vld [vmem:[#allocation10 + $0x20] sm:$0xff]
    %v460 = vld [vmem:[#allocation10 + $0x28] sm:$0xff]
    %v461 = vld [vmem:[#allocation10 + $0x30] sm:$0xff]
    %v462 = vld [vmem:[#allocation10 + $0x38] sm:$0xff]
    %v463 = vld [vmem:[#allocation10 + $0x40] sm:$0xff]
    %v464 = vld [vmem:[#allocation10 + $0x48] sm:$0xff]
    %v465 = vld [vmem:[#allocation10 + $0x50] sm:$0xff]
    %v466 = vld [vmem:[#allocation10 + $0x58] sm:$0xff]
    %v467 = vld [vmem:[#allocation10 + $0x60] sm:$0xff]
    %v468 = vld [vmem:[#allocation10 + $0x68] sm:$0xff]
    %v469 = vld [vmem:[#allocation10 + $0x70] sm:$0xff]
    %v470 = vld [vmem:[#allocation10 + $0x78] sm:$0xff]
    %471 = vmatprep.subr.mxu0 0.0
    %472 = vmatpush1.msra.mxu0 %v455
    %473 = vmatprep.subr.mxu0 0.0
    %474 = vmatpush1.msra.mxu0 %v456
    %475 = vmatprep.subr.mxu0 0.0
    %476 = vmatpush1.msra.mxu0 %v457
    %477 = vmatprep.subr.mxu0 0.0
    %478 = vmatpush1.msra.mxu0 %v458
    %479 = vmatprep.subr.mxu0 0.0
    %480 = vmatpush1.msra.mxu0 %v459
    %481 = vmatprep.subr.mxu0 0.0
    %482 = vmatpush1.msra.mxu0 %v460
    %483 = vmatprep.subr.mxu0 0.0
    %484 = vmatpush1.msra.mxu0 %v461
    %485 = vmatprep.subr.mxu0 0.0
    %486 = vmatpush1.msra.mxu0 %v462
    %487 = vmatprep.subr.mxu0 0.0
    %488 = vmatpush1.msra.mxu0 %v463
    %489 = vmatprep.subr.mxu0 0.0
    %490 = vmatpush1.msra.mxu0 %v464
    %491 = vmatprep.subr.mxu0 0.0
    %492 = vmatpush1.msra.mxu0 %v465
    %493 = vmatprep.subr.mxu0 0.0
    %494 = vmatpush1.msra.mxu0 %v466
    %495 = vmatprep.subr.mxu0 0.0
    %496 = vmatpush1.msra.mxu0 %v467
    %497 = vmatprep.subr.mxu0 0.0
    %498 = vmatpush1.msra.mxu0 %v468
    %499 = vmatprep.subr.mxu0 0.0
    %500 = vmatpush1.msra.mxu0 %v469
    %501 = vmatprep.subr.mxu0 0.0
    %502 = vmatpush1.msra.mxu0 %v470
    %503 = vmatprep.subr.mxu0 0.0
    %504 = vmatpush1.msra.mxu0 0.0
    %505 = vmatprep.subr.mxu0 0.0
    %506 = vmatpush1.msra.mxu0 0.0
    %507 = vmatprep.subr.mxu0 0.0
    %508 = vmatpush1.msra.mxu0 0.0
    %509 = vmatprep.subr.mxu0 0.0
    %510 = vmatpush1.msra.mxu0 0.0
    %511 = vmatprep.subr.mxu0 0.0
    %512 = vmatpush1.msra.mxu0 0.0
    %513 = vmatprep.subr.mxu0 0.0
    %514 = vmatpush1.msra.mxu0 0.0
    %515 = vmatprep.subr.mxu0 0.0
    %516 = vmatpush1.msra.mxu0 0.0
    %517 = vmatprep.subr.mxu0 0.0
    %518 = vmatpush1.msra.mxu0 0.0
    %519 = vmatprep.subr.mxu0 0.0
    %520 = vmatpush1.msra.mxu0 0.0
    %521 = vmatprep.subr.mxu0 0.0
    %522 = vmatpush1.msra.mxu0 0.0
    %523 = vmatprep.subr.mxu0 0.0
    %524 = vmatpush1.msra.mxu0 0.0
    %525 = vmatprep.subr.mxu0 0.0
    %526 = vmatpush1.msra.mxu0 0.0
    %527 = vmatprep.subr.mxu0 0.0
    %528 = vmatpush1.msra.mxu0 0.0
    %529 = vmatprep.subr.mxu0 0.0
    %530 = vmatpush1.msra.mxu0 0.0
    %531 = vmatprep.subr.mxu0 0.0
    %532 = vmatpush1.msra.mxu0 0.0
    %533 = vmatprep.subr.mxu0 0.0
    %534 = vmatpush1.msra.mxu0 0.0
    %535 = vmatprep.mubr.f32.mxu0 0.0
    %536 = vmatmul.mubr.f32.gmra.mrb[0].mxu0 %v447
    %v537 = vpop.f32.mrb[0].mxu0
    %v538 = vadd.f32 0.0, %v537
    %v539 = vpop.f32.mrb[0].mxu0
    %540 = vmatprep.mubr.f32.mxu0 0.0
    %541 = vmatmul.mubr.f32.gmra.mrb[0].mxu0 %v452
    %v542 = vpop.f32.mrb[0].mxu0
    %v543 = vadd.f32 0.0, %v542
    %v544 = vpop.f32.mrb[0].mxu0
    %545 = vdwg.mxu0
    %v546 = vlaneseq
    %v547 = vshrl.u32 %v546, 7
    %v548 = vadd.s32 %v547, 8
    %v549 = vlaneseq
    %v550 = vand.u32 %v549, 127
    %vm551 = vcmp.lt.s32.totalorder %v547, 8
    %vm552 = vcmp.lt.s32.totalorder %v548, 8
    %vm553 = vcmp.lt.s32.totalorder %v550, 64
    %v554 = vstv %s360
    %v555 = vsel %vm553, 1e+30, %v554
    %v556 = vstv %s361
    %v557 = vstv %s362
    %v558 = vsel %vm553, %v556, %v557
    %v559 = vsel %vm551, %v555, %v558
    %v560 = vsel %vm552, %v555, %v558
    %v561 = vsub.f32 %v538, %v559
    %v562 = vsub.f32 %v543, %v560
    %v563 = vmax.f32 %v561, 0.0
    %v564 = vmax.f32 %v562, 0.0
    %v565 = vsub.f32 0.0, %v538
    %v566 = vsub.f32 0.0, %v543
    %v567 = vsub.f32 %v565, %v559
    %v568 = vsub.f32 %v566, %v560
    %v569 = vmax.f32 %v567, 0.0
    %v570 = vmax.f32 %v568, 0.0
    %v571 = vsub.f32 %v563, %v569
    %v572 = vsub.f32 %v564, %v570
    %v573 = vld [vmem:[#allocation13] sm:$0xff]
    %v574 = vld [vmem:[#allocation13 + $0x8] sm:$0xff]
    %v575 = vld [vmem:[#allocation13 + $0x10] sm:$0xff]
    %v576 = vld [vmem:[#allocation13 + $0x18] sm:$0xff]
    %v577 = vld [vmem:[#allocation13 + $0x20] sm:$0xff]
    %v578 = vld [vmem:[#allocation13 + $0x28] sm:$0xff]
    %v579 = vld [vmem:[#allocation13 + $0x30] sm:$0xff]
    %v580 = vld [vmem:[#allocation13 + $0x38] sm:$0xff]
    %v581 = vld [vmem:[#allocation13 + $0x40] sm:$0xff]
    %v582 = vld [vmem:[#allocation13 + $0x48] sm:$0xff]
    %v583 = vld [vmem:[#allocation13 + $0x50] sm:$0xff]
    %v584 = vld [vmem:[#allocation13 + $0x58] sm:$0xff]
    %v585 = vld [vmem:[#allocation13 + $0x60] sm:$0xff]
    %v586 = vld [vmem:[#allocation13 + $0x68] sm:$0xff]
    %v587 = vld [vmem:[#allocation13 + $0x70] sm:$0xff]
    %v588 = vld [vmem:[#allocation13 + $0x78] sm:$0xff]
    %589 = vmatprep.subr.mxu0 0.0
    %590 = vmatpush1.msra.mxu0 %v573
    %591 = vmatprep.subr.mxu0 0.0
    %592 = vmatpush1.msra.mxu0 %v574
    %593 = vmatprep.subr.mxu0 0.0
    %594 = vmatpush1.msra.mxu0 %v575
    %595 = vmatprep.subr.mxu0 0.0
    %596 = vmatpush1.msra.mxu0 %v576
    %597 = vmatprep.subr.mxu0 0.0
    %598 = vmatpush1.msra.mxu0 %v577
    %599 = vmatprep.subr.mxu0 0.0
    %600 = vmatpush1.msra.mxu0 %v578
    %601 = vmatprep.subr.mxu0 0.0
    %602 = vmatpush1.msra.mxu0 %v579
    %603 = vmatprep.subr.mxu0 0.0
    %604 = vmatpush1.msra.mxu0 %v580
    %605 = vmatprep.subr.mxu0 0.0
    %606 = vmatpush1.msra.mxu0 %v581
    %607 = vmatprep.subr.mxu0 0.0
    %608 = vmatpush1.msra.mxu0 %v582
    %609 = vmatprep.subr.mxu0 0.0
    %610 = vmatpush1.msra.mxu0 %v583
    %611 = vmatprep.subr.mxu0 0.0
    %612 = vmatpush1.msra.mxu0 %v584
    %613 = vmatprep.subr.mxu0 0.0
    %614 = vmatpush1.msra.mxu0 %v585
    %615 = vmatprep.subr.mxu0 0.0
    %616 = vmatpush1.msra.mxu0 %v586
    %617 = vmatprep.subr.mxu0 0.0
    %618 = vmatpush1.msra.mxu0 %v587
    %619 = vmatprep.subr.mxu0 0.0
    %620 = vmatpush1.msra.mxu0 %v588
    %621 = vmatprep.subr.mxu0 0.0
    %622 = vmatpush1.msra.mxu0 0.0
    %623 = vmatprep.subr.mxu0 0.0
    %624 = vmatpush1.msra.mxu0 0.0
    %625 = vmatprep.subr.mxu0 0.0
    %626 = vmatpush1.msra.mxu0 0.0
    %627 = vmatprep.subr.mxu0 0.0
    %628 = vmatpush1.msra.mxu0 0.0
    %629 = vmatprep.subr.mxu0 0.0
    %630 = vmatpush1.msra.mxu0 0.0
    %631 = vmatprep.subr.mxu0 0.0
    %632 = vmatpush1.msra.mxu0 0.0
    %633 = vmatprep.subr.mxu0 0.0
    %634 = vmatpush1.msra.mxu0 0.0
    %635 = vmatprep.subr.mxu0 0.0
    %636 = vmatpush1.msra.mxu0 0.0
    %637 = vmatprep.subr.mxu0 0.0
    %638 = vmatpush1.msra.mxu0 0.0
    %639 = vmatprep.subr.mxu0 0.0
    %640 = vmatpush1.msra.mxu0 0.0
    %641 = vmatprep.subr.mxu0 0.0
    %642 = vmatpush1.msra.mxu0 0.0
    %643 = vmatprep.subr.mxu0 0.0
    %644 = vmatpush1.msra.mxu0 0.0
    %645 = vmatprep.subr.mxu0 0.0
    %646 = vmatpush1.msra.mxu0 0.0
    %647 = vmatprep.subr.mxu0 0.0
    %648 = vmatpush1.msra.mxu0 0.0
    %649 = vmatprep.subr.mxu0 0.0
    %650 = vmatpush1.msra.mxu0 0.0
    %651 = vmatprep.subr.mxu0 0.0
    %652 = vmatpush1.msra.mxu0 0.0
    %653 = vmatprep.mubr.f32.mxu0 0.0
    %654 = vmatmul.mubr.f32.gmra.mrb[0].mxu0 %v571
    %v655 = vpop.f32.mrb[0].mxu0
    %v656 = vadd.f32 0.0, %v655
    %v657 = vpop.f32.mrb[0].mxu0
    %658 = vmatprep.mubr.f32.mxu0 0.0
    %659 = vmatmul.mubr.f32.gmra.mrb[0].mxu0 %v572
    %v660 = vpop.f32.mrb[0].mxu0
    %v661 = vadd.f32 0.0, %v660
    %v662 = vpop.f32.mrb[0].mxu0
    %663 = vdwg.mxu0
    %v664 = vld [vmem:[#allocation11] sm:$0xff]
    %v665 = vld [vmem:[#allocation11 + $0x8] sm:$0xff]
    %v666 = vld [vmem:[#allocation14] sm:$0xff]
    %v668 = vsel %vm257, %v666, 0
    %670 = vmatprep.subr.mxu0 0.0
    %671 = vmatpush1.msra.mxu0 %v358
    %672 = vmatprep.subr.mxu0 0.0
    %673 = vmatpush1.msra.mxu0 %v359
    %674 = vmatprep.subr.mxu0 0.0
    %675 = vmatpush1.msra.mxu0 0.0
    %676 = vmatprep.subr.mxu0 0.0
    %677 = vmatpush1.msra.mxu0 0.0
    %678 = vmatprep.subr.mxu0 0.0
    %679 = vmatpush1.msra.mxu0 0.0
    %680 = vmatprep.subr.mxu0 0.0
    %681 = vmatpush1.msra.mxu0 0.0
    %682 = vmatprep.subr.mxu0 0.0
    %683 = vmatpush1.msra.mxu0 0.0
    %684 = vmatprep.subr.mxu0 0.0
    %685 = vmatpush1.msra.mxu0 0.0
    %686 = vmatprep.subr.mxu0 0.0
    %687 = vmatpush1.msra.mxu0 0.0
    %688 = vmatprep.subr.mxu0 0.0
    %689 = vmatpush1.msra.mxu0 0.0
    %690 = vmatprep.subr.mxu0 0.0
    %691 = vmatpush1.msra.mxu0 0.0
    %692 = vmatprep.subr.mxu0 0.0
    %693 = vmatpush1.msra.mxu0 0.0
    %694 = vmatprep.subr.mxu0 0.0
    %695 = vmatpush1.msra.mxu0 0.0
    %696 = vmatprep.subr.mxu0 0.0
    %697 = vmatpush1.msra.mxu0 0.0
    %698 = vmatprep.subr.mxu0 0.0
    %699 = vmatpush1.msra.mxu0 0.0
    %700 = vmatprep.subr.mxu0 0.0
    %701 = vmatpush1.msra.mxu0 0.0
    %702 = vmatprep.subr.mxu0 0.0
    %703 = vmatpush1.msra.mxu0 0.0
    %704 = vmatprep.subr.mxu0 0.0
    %705 = vmatpush1.msra.mxu0 0.0
    %706 = vmatprep.subr.mxu0 0.0
    %707 = vmatpush1.msra.mxu0 0.0
    %708 = vmatprep.subr.mxu0 0.0
    %709 = vmatpush1.msra.mxu0 0.0
    %710 = vmatprep.subr.mxu0 0.0
    %711 = vmatpush1.msra.mxu0 0.0
    %712 = vmatprep.subr.mxu0 0.0
    %713 = vmatpush1.msra.mxu0 0.0
    %714 = vmatprep.subr.mxu0 0.0
    %715 = vmatpush1.msra.mxu0 0.0
    %716 = vmatprep.subr.mxu0 0.0
    %717 = vmatpush1.msra.mxu0 0.0
    %718 = vmatprep.subr.mxu0 0.0
    %719 = vmatpush1.msra.mxu0 0.0
    %720 = vmatprep.subr.mxu0 0.0
    %721 = vmatpush1.msra.mxu0 0.0
    %722 = vmatprep.subr.mxu0 0.0
    %723 = vmatpush1.msra.mxu0 0.0
    %724 = vmatprep.subr.mxu0 0.0
    %725 = vmatpush1.msra.mxu0 0.0
    %726 = vmatprep.subr.mxu0 0.0
    %727 = vmatpush1.msra.mxu0 0.0
    %728 = vmatprep.subr.mxu0 0.0
    %729 = vmatpush1.msra.mxu0 0.0
    %730 = vmatprep.subr.mxu0 0.0
    %731 = vmatpush1.msra.mxu0 0.0
    %732 = vmatprep.subr.mxu0 0.0
    %733 = vmatpush1.msra.mxu0 0.0
    %734 = vmatprep.mubr.f32.mxu0 0.0
    %735 = vmatmul.mubr.f32.gmra.mrb[0].mxu0 %v668
    %v736 = vpop.f32.mrb[0].mxu0
    %v737 = vadd.f32 0.0, %v736
    %v738 = vpop.f32.mrb[0].mxu0
    %739 = vdwg.mxu0
    %v740 = vld [vmem:[#allocation16] sm:$0xff]
    %v741 = vld [vmem:[#allocation16 + $0x8] sm:$0xff]
    %v742 = vld [vmem:[#allocation16 + $0x10] sm:$0xff]
    %v743 = vld [vmem:[#allocation16 + $0x18] sm:$0xff]
    %v744 = vld [vmem:[#allocation16 + $0x20] sm:$0xff]
    %v745 = vld [vmem:[#allocation16 + $0x28] sm:$0xff]
    %v746 = vld [vmem:[#allocation16 + $0x30] sm:$0xff]
    %v747 = vld [vmem:[#allocation16 + $0x38] sm:$0xff]
    %v748 = vld [vmem:[#allocation16 + $0x40] sm:$0xff]
    %v749 = vld [vmem:[#allocation16 + $0x48] sm:$0xff]
    %v750 = vld [vmem:[#allocation16 + $0x50] sm:$0xff]
    %v751 = vld [vmem:[#allocation16 + $0x58] sm:$0xff]
    %v752 = vld [vmem:[#allocation16 + $0x60] sm:$0xff]
    %v753 = vld [vmem:[#allocation16 + $0x68] sm:$0xff]
    %v754 = vld [vmem:[#allocation16 + $0x70] sm:$0xff]
    %v755 = vld [vmem:[#allocation16 + $0x78] sm:$0xff]
    %756 = vmatprep.subr.mxu0 0.0
    %757 = vmatpush1.msra.mxu0 %v740
    %758 = vmatprep.subr.mxu0 0.0
    %759 = vmatpush1.msra.mxu0 %v741
    %760 = vmatprep.subr.mxu0 0.0
    %761 = vmatpush1.msra.mxu0 %v742
    %762 = vmatprep.subr.mxu0 0.0
    %763 = vmatpush1.msra.mxu0 %v743
    %764 = vmatprep.subr.mxu0 0.0
    %765 = vmatpush1.msra.mxu0 %v744
    %766 = vmatprep.subr.mxu0 0.0
    %767 = vmatpush1.msra.mxu0 %v745
    %768 = vmatprep.subr.mxu0 0.0
    %769 = vmatpush1.msra.mxu0 %v746
    %770 = vmatprep.subr.mxu0 0.0
    %771 = vmatpush1.msra.mxu0 %v747
    %772 = vmatprep.subr.mxu0 0.0
    %773 = vmatpush1.msra.mxu0 %v748
    %774 = vmatprep.subr.mxu0 0.0
    %775 = vmatpush1.msra.mxu0 %v749
    %776 = vmatprep.subr.mxu0 0.0
    %777 = vmatpush1.msra.mxu0 %v750
    %778 = vmatprep.subr.mxu0 0.0
    %779 = vmatpush1.msra.mxu0 %v751
    %780 = vmatprep.subr.mxu0 0.0
    %781 = vmatpush1.msra.mxu0 %v752
    %782 = vmatprep.subr.mxu0 0.0
    %783 = vmatpush1.msra.mxu0 %v753
    %784 = vmatprep.subr.mxu0 0.0
    %785 = vmatpush1.msra.mxu0 %v754
    %786 = vmatprep.subr.mxu0 0.0
    %787 = vmatpush1.msra.mxu0 %v755
    %788 = vmatprep.subr.mxu0 0.0
    %789 = vmatpush1.msra.mxu0 0.0
    %790 = vmatprep.subr.mxu0 0.0
    %791 = vmatpush1.msra.mxu0 0.0
    %792 = vmatprep.subr.mxu0 0.0
    %793 = vmatpush1.msra.mxu0 0.0
    %794 = vmatprep.subr.mxu0 0.0
    %795 = vmatpush1.msra.mxu0 0.0
    %796 = vmatprep.subr.mxu0 0.0
    %797 = vmatpush1.msra.mxu0 0.0
    %798 = vmatprep.subr.mxu0 0.0
    %799 = vmatpush1.msra.mxu0 0.0
    %800 = vmatprep.subr.mxu0 0.0
    %801 = vmatpush1.msra.mxu0 0.0
    %802 = vmatprep.subr.mxu0 0.0
    %803 = vmatpush1.msra.mxu0 0.0
    %804 = vmatprep.subr.mxu0 0.0
    %805 = vmatpush1.msra.mxu0 0.0
    %806 = vmatprep.subr.mxu0 0.0
    %807 = vmatpush1.msra.mxu0 0.0
    %808 = vmatprep.subr.mxu0 0.0
    %809 = vmatpush1.msra.mxu0 0.0
    %810 = vmatprep.subr.mxu0 0.0
    %811 = vmatpush1.msra.mxu0 0.0
    %812 = vmatprep.subr.mxu0 0.0
    %813 = vmatpush1.msra.mxu0 0.0
    %814 = vmatprep.subr.mxu0 0.0
    %815 = vmatpush1.msra.mxu0 0.0
    %816 = vmatprep.subr.mxu0 0.0
    %817 = vmatpush1.msra.mxu0 0.0
    %818 = vmatprep.subr.mxu0 0.0
    %819 = vmatpush1.msra.mxu0 0.0
    %820 = vmatprep.mubr.f32.mxu0 0.0
    %821 = vmatmul.mubr.f32.gmra.mrb[0].mxu0 %v737
    %v822 = vpop.f32.mrb[0].mxu0
    %v823 = vadd.f32 0.0, %v822
    %v824 = vpop.f32.mrb[0].mxu0
    %825 = vdwg.mxu0
    %vm826 = vcmp.lt.s32.totalorder %v547, 4
    %vm827 = vcmp.lt.s32.totalorder %v550, 32
    %v828 = vstv %s363
    %v829 = vsel %vm827, 1e+30, %v828
    %v830 = vstv %s364
    %v831 = vstv %s365
    %v832 = vsel %vm827, %v830, %v831
    %v833 = vsel %vm826, %v829, %v832
    %v834 = vsub.f32 %v823, %v833
    %v835 = vmax.f32 %v834, 0.0
    %v836 = vsub.f32 0.0, %v823
    %v837 = vsub.f32 %v836, %v833
    %v838 = vmax.f32 %v837, 0.0
    %v839 = vsub.f32 %v835, %v838
    %v840 = vld [vmem:[#allocation19] sm:$0xff]
    %v841 = vld [vmem:[#allocation19 + $0x8] sm:$0xff]
    %v842 = vld [vmem:[#allocation19 + $0x10] sm:$0xff]
    %v843 = vld [vmem:[#allocation19 + $0x18] sm:$0xff]
    %v844 = vld [vmem:[#allocation19 + $0x20] sm:$0xff]
    %v845 = vld [vmem:[#allocation19 + $0x28] sm:$0xff]
    %v846 = vld [vmem:[#allocation19 + $0x30] sm:$0xff]
    %v847 = vld [vmem:[#allocation19 + $0x38] sm:$0xff]
    %vm848 = vcmask 523264
    %v850 = vsel %vm848, %v839, 0
    %852 = vmatprep.subr.mxu0 0.0
    %853 = vmatpush1.msra.mxu0 %v840
    %854 = vmatprep.subr.mxu0 0.0
    %855 = vmatpush1.msra.mxu0 %v841
    %856 = vmatprep.subr.mxu0 0.0
    %857 = vmatpush1.msra.mxu0 %v842
    %858 = vmatprep.subr.mxu0 0.0
    %859 = vmatpush1.msra.mxu0 %v843
    %860 = vmatprep.subr.mxu0 0.0
    %861 = vmatpush1.msra.mxu0 %v844
    %862 = vmatprep.subr.mxu0 0.0
    %863 = vmatpush1.msra.mxu0 %v845
    %864 = vmatprep.subr.mxu0 0.0
    %865 = vmatpush1.msra.mxu0 %v846
    %866 = vmatprep.subr.mxu0 0.0
    %867 = vmatpush1.msra.mxu0 %v847
    %868 = vmatprep.subr.mxu0 0.0
    %869 = vmatpush1.msra.mxu0 0.0
    %870 = vmatprep.subr.mxu0 0.0
    %871 = vmatpush1.msra.mxu0 0.0
    %872 = vmatprep.subr.mxu0 0.0
    %873 = vmatpush1.msra.mxu0 0.0
    %874 = vmatprep.subr.mxu0 0.0
    %875 = vmatpush1.msra.mxu0 0.0
    %876 = vmatprep.subr.mxu0 0.0
    %877 = vmatpush1.msra.mxu0 0.0
    %878 = vmatprep.subr.mxu0 0.0
    %879 = vmatpush1.msra.mxu0 0.0
    %880 = vmatprep.subr.mxu0 0.0
    %881 = vmatpush1.msra.mxu0 0.0
    %882 = vmatprep.subr.mxu0 0.0
    %883 = vmatpush1.msra.mxu0 0.0
    %884 = vmatprep.subr.mxu0 0.0
    %885 = vmatpush1.msra.mxu0 0.0
    %886 = vmatprep.subr.mxu0 0.0
    %887 = vmatpush1.msra.mxu0 0.0
    %888 = vmatprep.subr.mxu0 0.0
    %889 = vmatpush1.msra.mxu0 0.0
    %890 = vmatprep.subr.mxu0 0.0
    %891 = vmatpush1.msra.mxu0 0.0
    %892 = vmatprep.subr.mxu0 0.0
    %893 = vmatpush1.msra.mxu0 0.0
    %894 = vmatprep.subr.mxu0 0.0
    %895 = vmatpush1.msra.mxu0 0.0
    %896 = vmatprep.subr.mxu0 0.0
    %897 = vmatpush1.msra.mxu0 0.0
    %898 = vmatprep.subr.mxu0 0.0
    %899 = vmatpush1.msra.mxu0 0.0
    %900 = vmatprep.subr.mxu0 0.0
    %901 = vmatpush1.msra.mxu0 0.0
    %902 = vmatprep.subr.mxu0 0.0
    %903 = vmatpush1.msra.mxu0 0.0
    %904 = vmatprep.subr.mxu0 0.0
    %905 = vmatpush1.msra.mxu0 0.0
    %906 = vmatprep.subr.mxu0 0.0
    %907 = vmatpush1.msra.mxu0 0.0
    %908 = vmatprep.subr.mxu0 0.0
    %909 = vmatpush1.msra.mxu0 0.0
    %910 = vmatprep.subr.mxu0 0.0
    %911 = vmatpush1.msra.mxu0 0.0
    %912 = vmatprep.subr.mxu0 0.0
    %913 = vmatpush1.msra.mxu0 0.0
    %914 = vmatprep.subr.mxu0 0.0
    %915 = vmatpush1.msra.mxu0 0.0
    %916 = vmatprep.mubr.f32.mxu0 0.0
    %917 = vmatmul.mubr.f32.gmra.mrb[0].mxu0 %v850
    %v918 = vpop.f32.mrb[0].mxu0
    %v919 = vadd.f32 0.0, %v918
    %v920 = vpop.f32.mrb[0].mxu0
    %921 = vdwg.mxu0
    %v922 = vld [vmem:[#allocation17] sm:$0xff]
    %v923 = vld [vmem:[#allocation17 + $0x8] sm:$0xff]
    %vm924 = vcmask 64512
    %v926 = vsel %vm924, %v922, 0
    %v929 = vsel %vm924, %v923, 0
    %931 = vmatprep.subr.mxu0 0.0
    %932 = vmatpush1.msra.mxu0 %v919
    %933 = vmatprep.subr.mxu0 0.0
    %934 = vmatpush1.msra.mxu0 0.0
    %935 = vmatprep.subr.mxu0 0.0
    %936 = vmatpush1.msra.mxu0 0.0
    %937 = vmatprep.subr.mxu0 0.0
    %938 = vmatpush1.msra.mxu0 0.0
    %939 = vmatprep.subr.mxu0 0.0
    %940 = vmatpush1.msra.mxu0 0.0
    %941 = vmatprep.subr.mxu0 0.0
    %942 = vmatpush1.msra.mxu0 0.0
    %943 = vmatprep.subr.mxu0 0.0
    %944 = vmatpush1.msra.mxu0 0.0
    %945 = vmatprep.subr.mxu0 0.0
    %946 = vmatpush1.msra.mxu0 0.0
    %947 = vmatprep.subr.mxu0 0.0
    %948 = vmatpush1.msra.mxu0 0.0
    %949 = vmatprep.subr.mxu0 0.0
    %950 = vmatpush1.msra.mxu0 0.0
    %951 = vmatprep.subr.mxu0 0.0
    %952 = vmatpush1.msra.mxu0 0.0
    %953 = vmatprep.subr.mxu0 0.0
    %954 = vmatpush1.msra.mxu0 0.0
    %955 = vmatprep.subr.mxu0 0.0
    %956 = vmatpush1.msra.mxu0 0.0
    %957 = vmatprep.subr.mxu0 0.0
    %958 = vmatpush1.msra.mxu0 0.0
    %959 = vmatprep.subr.mxu0 0.0
    %960 = vmatpush1.msra.mxu0 0.0
    %961 = vmatprep.subr.mxu0 0.0
    %962 = vmatpush1.msra.mxu0 0.0
    %963 = vmatprep.subr.mxu0 0.0
    %964 = vmatpush1.msra.mxu0 0.0
    %965 = vmatprep.subr.mxu0 0.0
    %966 = vmatpush1.msra.mxu0 0.0
    %967 = vmatprep.subr.mxu0 0.0
    %968 = vmatpush1.msra.mxu0 0.0
    %969 = vmatprep.subr.mxu0 0.0
    %970 = vmatpush1.msra.mxu0 0.0
    %971 = vmatprep.subr.mxu0 0.0
    %972 = vmatpush1.msra.mxu0 0.0
    %973 = vmatprep.subr.mxu0 0.0
    %974 = vmatpush1.msra.mxu0 0.0
    %975 = vmatprep.subr.mxu0 0.0
    %976 = vmatpush1.msra.mxu0 0.0
    %977 = vmatprep.subr.mxu0 0.0
    %978 = vmatpush1.msra.mxu0 0.0
    %979 = vmatprep.subr.mxu0 0.0
    %980 = vmatpush1.msra.mxu0 0.0
    %981 = vmatprep.subr.mxu0 0.0
    %982 = vmatpush1.msra.mxu0 0.0
    %983 = vmatprep.subr.mxu0 0.0
    %984 = vmatpush1.msra.mxu0 0.0
    %985 = vmatprep.subr.mxu0 0.0
    %986 = vmatpush1.msra.mxu0 0.0
    %987 = vmatprep.subr.mxu0 0.0
    %988 = vmatpush1.msra.mxu0 0.0
    %989 = vmatprep.subr.mxu0 0.0
    %990 = vmatpush1.msra.mxu0 0.0
    %991 = vmatprep.subr.mxu0 0.0
    %992 = vmatpush1.msra.mxu0 0.0
    %993 = vmatprep.subr.mxu0 0.0
    %994 = vmatpush1.msra.mxu0 0.0
    %995 = vmatprep.mubr.f32.mxu0 0.0
    %996 = vmatmul.mubr.f32.gmra.mrb[0].mxu0 %v926
    %v997 = vpop.f32.mrb[0].mxu0
    %v998 = vadd.f32 0.0, %v997
    %v999 = vpop.f32.mrb[0].mxu0
    %1000 = vmatprep.mubr.f32.mxu0 0.0
    %1001 = vmatmul.mubr.f32.gmra.mrb[0].mxu0 %v929
    %v1002 = vpop.f32.mrb[0].mxu0
    %v1003 = vadd.f32 0.0, %v1002
    %v1004 = vpop.f32.mrb[0].mxu0
    %1005 = vdwg.mxu0
    %v1007 = vsel %vm257, %v664, 0
    %v1010 = vsel %vm257, %v665, 0
    %1012 = vmatprep.subr.mxu0 0.0
    %1013 = vmatpush1.msra.mxu0 %v656
    %1014 = vmatprep.subr.mxu0 0.0
    %1015 = vmatpush1.msra.mxu0 %v661
    %1016 = vmatprep.subr.mxu0 0.0
    %1017 = vmatpush1.msra.mxu0 0.0
    %1018 = vmatprep.subr.mxu0 0.0
    %1019 = vmatpush1.msra.mxu0 0.0
    %1020 = vmatprep.subr.mxu0 0.0
    %1021 = vmatpush1.msra.mxu0 0.0
    %1022 = vmatprep.subr.mxu0 0.0
    %1023 = vmatpush1.msra.mxu0 0.0
    %1024 = vmatprep.subr.mxu0 0.0
    %1025 = vmatpush1.msra.mxu0 0.0
    %1026 = vmatprep.subr.mxu0 0.0
    %1027 = vmatpush1.msra.mxu0 0.0
    %1028 = vmatprep.subr.mxu0 0.0
    %1029 = vmatpush1.msra.mxu0 0.0
    %1030 = vmatprep.subr.mxu0 0.0
    %1031 = vmatpush1.msra.mxu0 0.0
    %1032 = vmatprep.subr.mxu0 0.0
    %1033 = vmatpush1.msra.mxu0 0.0
    %1034 = vmatprep.subr.mxu0 0.0
    %1035 = vmatpush1.msra.mxu0 0.0
    %1036 = vmatprep.subr.mxu0 0.0
    %1037 = vmatpush1.msra.mxu0 0.0
    %1038 = vmatprep.subr.mxu0 0.0
    %1039 = vmatpush1.msra.mxu0 0.0
    %1040 = vmatprep.subr.mxu0 0.0
    %1041 = vmatpush1.msra.mxu0 0.0
    %1042 = vmatprep.subr.mxu0 0.0
    %1043 = vmatpush1.msra.mxu0 0.0
    %1044 = vmatprep.subr.mxu0 0.0
    %1045 = vmatpush1.msra.mxu0 0.0
    %1046 = vmatprep.subr.mxu0 0.0
    %1047 = vmatpush1.msra.mxu0 0.0
    %1048 = vmatprep.subr.mxu0 0.0
    %1049 = vmatpush1.msra.mxu0 0.0
    %1050 = vmatprep.subr.mxu0 0.0
    %1051 = vmatpush1.msra.mxu0 0.0
    %1052 = vmatprep.subr.mxu0 0.0
    %1053 = vmatpush1.msra.mxu0 0.0
    %1054 = vmatprep.subr.mxu0 0.0
    %1055 = vmatpush1.msra.mxu0 0.0
    %1056 = vmatprep.subr.mxu0 0.0
    %1057 = vmatpush1.msra.mxu0 0.0
    %1058 = vmatprep.subr.mxu0 0.0
    %1059 = vmatpush1.msra.mxu0 0.0
    %1060 = vmatprep.subr.mxu0 0.0
    %1061 = vmatpush1.msra.mxu0 0.0
    %1062 = vmatprep.subr.mxu0 0.0
    %1063 = vmatpush1.msra.mxu0 0.0
    %1064 = vmatprep.subr.mxu0 0.0
    %1065 = vmatpush1.msra.mxu0 0.0
    %1066 = vmatprep.subr.mxu0 0.0
    %1067 = vmatpush1.msra.mxu0 0.0
    %1068 = vmatprep.subr.mxu0 0.0
    %1069 = vmatpush1.msra.mxu0 0.0
    %1070 = vmatprep.subr.mxu0 0.0
    %1071 = vmatpush1.msra.mxu0 0.0
    %1072 = vmatprep.subr.mxu0 0.0
    %1073 = vmatpush1.msra.mxu0 0.0
    %1074 = vmatprep.subr.mxu0 0.0
    %1075 = vmatpush1.msra.mxu0 0.0
    %1076 = vmatprep.mubr.f32.mxu0 0.0
    %1077 = vmatmul.mubr.f32.gmra.mrb[0].mxu0 %v1007
    %v1078 = vpop.f32.mrb[0].mxu0
    %v1079 = vadd.f32 %v998, %v1078
    %v1080 = vpop.f32.mrb[0].mxu0
    %1081 = vmatprep.mubr.f32.mxu0 0.0
    %1082 = vmatmul.mubr.f32.gmra.mrb[0].mxu0 %v1010
    %v1083 = vpop.f32.mrb[0].mxu0
    %v1084 = vadd.f32 %v1003, %v1083
    %v1085 = vpop.f32.mrb[0].mxu0
    %1086 = vdwg.mxu0
    %v1087 = vld [vmem:[#allocation20] sm:$0xf]
    %v1089 = vsel %vm257, %v1087, 0
    %1091 = vmatprep.subr.mxu0 0.0
    %1092 = vmatpush1.msra.mxu0 %v358
    %1093 = vmatprep.subr.mxu0 0.0
    %1094 = vmatpush1.msra.mxu0 %v359
    %1095 = vmatprep.subr.mxu0 0.0
    %1096 = vmatpush1.msra.mxu0 0.0
    %1097 = vmatprep.subr.mxu0 0.0
    %1098 = vmatpush1.msra.mxu0 0.0
    %1099 = vmatprep.subr.mxu0 0.0
    %1100 = vmatpush1.msra.mxu0 0.0
    %1101 = vmatprep.subr.mxu0 0.0
    %1102 = vmatpush1.msra.mxu0 0.0
    %1103 = vmatprep.subr.mxu0 0.0
    %1104 = vmatpush1.msra.mxu0 0.0
    %1105 = vmatprep.subr.mxu0 0.0
    %1106 = vmatpush1.msra.mxu0 0.0
    %1107 = vmatprep.subr.mxu0 0.0
    %1108 = vmatpush1.msra.mxu0 0.0
    %1109 = vmatprep.subr.mxu0 0.0
    %1110 = vmatpush1.msra.mxu0 0.0
    %1111 = vmatprep.subr.mxu0 0.0
    %1112 = vmatpush1.msra.mxu0 0.0
    %1113 = vmatprep.subr.mxu0 0.0
    %1114 = vmatpush1.msra.mxu0 0.0
    %1115 = vmatprep.subr.mxu0 0.0
    %1116 = vmatpush1.msra.mxu0 0.0
    %1117 = vmatprep.subr.mxu0 0.0
    %1118 = vmatpush1.msra.mxu0 0.0
    %1119 = vmatprep.subr.mxu0 0.0
    %1120 = vmatpush1.msra.mxu0 0.0
    %1121 = vmatprep.subr.mxu0 0.0
    %1122 = vmatpush1.msra.mxu0 0.0
    %1123 = vmatprep.subr.mxu0 0.0
    %1124 = vmatpush1.msra.mxu0 0.0
    %1125 = vmatprep.subr.mxu0 0.0
    %1126 = vmatpush1.msra.mxu0 0.0
    %1127 = vmatprep.subr.mxu0 0.0
    %1128 = vmatpush1.msra.mxu0 0.0
    %1129 = vmatprep.subr.mxu0 0.0
    %1130 = vmatpush1.msra.mxu0 0.0
    %1131 = vmatprep.subr.mxu0 0.0
    %1132 = vmatpush1.msra.mxu0 0.0
    %1133 = vmatprep.subr.mxu0 0.0
    %1134 = vmatpush1.msra.mxu0 0.0
    %1135 = vmatprep.subr.mxu0 0.0
    %1136 = vmatpush1.msra.mxu0 0.0
    %1137 = vmatprep.subr.mxu0 0.0
    %1138 = vmatpush1.msra.mxu0 0.0
    %1139 = vmatprep.subr.mxu0 0.0
    %1140 = vmatpush1.msra.mxu0 0.0
    %1141 = vmatprep.subr.mxu0 0.0
    %1142 = vmatpush1.msra.mxu0 0.0
    %1143 = vmatprep.subr.mxu0 0.0
    %1144 = vmatpush1.msra.mxu0 0.0
    %1145 = vmatprep.subr.mxu0 0.0
    %1146 = vmatpush1.msra.mxu0 0.0
    %1147 = vmatprep.subr.mxu0 0.0
    %1148 = vmatpush1.msra.mxu0 0.0
    %1149 = vmatprep.subr.mxu0 0.0
    %1150 = vmatpush1.msra.mxu0 0.0
    %1151 = vmatprep.subr.mxu0 0.0
    %1152 = vmatpush1.msra.mxu0 0.0
    %1153 = vmatprep.subr.mxu0 0.0
    %1154 = vmatpush1.msra.mxu0 0.0
    %1155 = vmatprep.mubr.f32.mxu0 0.0
    %1156 = vmatmul.mubr.f32.gmra.mrb[0].mxu0 %v1089
    %v1157 = vpop.f32.mrb[0].mxu0
    %v1158 = vadd.f32 0.0, %v1157
    %v1159 = vpop.f32.mrb[0].mxu0
    %1160 = vdwg.mxu0
    %v1161 = vld [vmem:[#allocation22] sm:$0xff]
    %v1162 = vld [vmem:[#allocation22 + $0x8] sm:$0xff]
    %v1163 = vld [vmem:[#allocation22 + $0x10] sm:$0xff]
    %v1164 = vld [vmem:[#allocation22 + $0x18] sm:$0xff]
    %v1165 = vld [vmem:[#allocation22 + $0x20] sm:$0xff]
    %v1166 = vld [vmem:[#allocation22 + $0x28] sm:$0xff]
    %v1167 = vld [vmem:[#allocation22 + $0x30] sm:$0xff]
    %v1168 = vld [vmem:[#allocation22 + $0x38] sm:$0xff]
    %v1169 = vld [vmem:[#allocation22 + $0x40] sm:$0xff]
    %v1170 = vld [vmem:[#allocation22 + $0x48] sm:$0xff]
    %v1171 = vld [vmem:[#allocation22 + $0x50] sm:$0xff]
    %v1172 = vld [vmem:[#allocation22 + $0x58] sm:$0xff]
    %v1173 = vld [vmem:[#allocation22 + $0x60] sm:$0xff]
    %v1174 = vld [vmem:[#allocation22 + $0x68] sm:$0xff]
    %v1175 = vld [vmem:[#allocation22 + $0x70] sm:$0xff]
    %v1176 = vld [vmem:[#allocation22 + $0x78] sm:$0xff]
    %1177 = vmatprep.subr.mxu0 0.0
    %1178 = vmatpush1.msra.mxu0 %v1161
    %1179 = vmatprep.subr.mxu0 0.0
    %1180 = vmatpush1.msra.mxu0 %v1162
    %1181 = vmatprep.subr.mxu0 0.0
    %1182 = vmatpush1.msra.mxu0 %v1163
    %1183 = vmatprep.subr.mxu0 0.0
    %1184 = vmatpush1.msra.mxu0 %v1164
    %1185 = vmatprep.subr.mxu0 0.0
    %1186 = vmatpush1.msra.mxu0 %v1165
    %1187 = vmatprep.subr.mxu0 0.0
    %1188 = vmatpush1.msra.mxu0 %v1166
    %1189 = vmatprep.subr.mxu0 0.0
    %1190 = vmatpush1.msra.mxu0 %v1167
    %1191 = vmatprep.subr.mxu0 0.0
    %1192 = vmatpush1.msra.mxu0 %v1168
    %1193 = vmatprep.subr.mxu0 0.0
    %1194 = vmatpush1.msra.mxu0 %v1169
    %1195 = vmatprep.subr.mxu0 0.0
    %1196 = vmatpush1.msra.mxu0 %v1170
    %1197 = vmatprep.subr.mxu0 0.0
    %1198 = vmatpush1.msra.mxu0 %v1171
    %1199 = vmatprep.subr.mxu0 0.0
    %1200 = vmatpush1.msra.mxu0 %v1172
    %1201 = vmatprep.subr.mxu0 0.0
    %1202 = vmatpush1.msra.mxu0 %v1173
    %1203 = vmatprep.subr.mxu0 0.0
    %1204 = vmatpush1.msra.mxu0 %v1174
    %1205 = vmatprep.subr.mxu0 0.0
    %1206 = vmatpush1.msra.mxu0 %v1175
    %1207 = vmatprep.subr.mxu0 0.0
    %1208 = vmatpush1.msra.mxu0 %v1176
    %1209 = vmatprep.subr.mxu0 0.0
    %1210 = vmatpush1.msra.mxu0 0.0
    %1211 = vmatprep.subr.mxu0 0.0
    %1212 = vmatpush1.msra.mxu0 0.0
    %1213 = vmatprep.subr.mxu0 0.0
    %1214 = vmatpush1.msra.mxu0 0.0
    %1215 = vmatprep.subr.mxu0 0.0
    %1216 = vmatpush1.msra.mxu0 0.0
    %1217 = vmatprep.subr.mxu0 0.0
    %1218 = vmatpush1.msra.mxu0 0.0
    %1219 = vmatprep.subr.mxu0 0.0
    %1220 = vmatpush1.msra.mxu0 0.0
    %1221 = vmatprep.subr.mxu0 0.0
    %1222 = vmatpush1.msra.mxu0 0.0
    %1223 = vmatprep.subr.mxu0 0.0
    %1224 = vmatpush1.msra.mxu0 0.0
    %1225 = vmatprep.subr.mxu0 0.0
    %1226 = vmatpush1.msra.mxu0 0.0
    %1227 = vmatprep.subr.mxu0 0.0
    %1228 = vmatpush1.msra.mxu0 0.0
    %1229 = vmatprep.subr.mxu0 0.0
    %1230 = vmatpush1.msra.mxu0 0.0
    %1231 = vmatprep.subr.mxu0 0.0
    %1232 = vmatpush1.msra.mxu0 0.0
    %1233 = vmatprep.subr.mxu0 0.0
    %1234 = vmatpush1.msra.mxu0 0.0
    %1235 = vmatprep.subr.mxu0 0.0
    %1236 = vmatpush1.msra.mxu0 0.0
    %1237 = vmatprep.subr.mxu0 0.0
    %1238 = vmatpush1.msra.mxu0 0.0
    %1239 = vmatprep.subr.mxu0 0.0
    %1240 = vmatpush1.msra.mxu0 0.0
    %1241 = vmatprep.mubr.f32.mxu0 0.0
    %1242 = vmatmul.mubr.f32.gmra.mrb[0].mxu0 %v1158
    %v1243 = vpop.f32.mrb[0].mxu0
    %v1244 = vadd.f32 0.0, %v1243
    %v1245 = vpop.f32.mrb[0].mxu0
    %1246 = vdwg.mxu0
    %vm1247 = vcmp.lt.s32.totalorder %v547, 2
    %vm1248 = vcmp.lt.s32.totalorder %v550, 16
    %v1249 = vstv %s366
    %v1250 = vsel %vm1248, 1e+30, %v1249
    %v1251 = vstv %s367
    %v1252 = vstv %s368
    %v1253 = vsel %vm1248, %v1251, %v1252
    %v1254 = vsel %vm1247, %v1250, %v1253
    %v1255 = vsub.f32 %v1244, %v1254
    %v1256 = vmax.f32 %v1255, 0.0
    %v1257 = vsub.f32 0.0, %v1244
    %v1258 = vsub.f32 %v1257, %v1254
    %v1259 = vmax.f32 %v1258, 0.0
    %v1260 = vsub.f32 %v1256, %v1259
    %v1261 = vld [vmem:[%s13] sm:$0xff]
    %v1262 = vld [vmem:[%s13 + $0x8] sm:$0xff]
    %v1263 = vld [vmem:[%s13 + $0x10] sm:$0xff]
    %v1264 = vld [vmem:[%s13 + $0x18] sm:$0xff]
    %vm1265 = vcmask 261120
    %v1267 = vsel %vm1265, %v1260, 0
    %1269 = vmatprep.subr.mxu0 0.0
    %1270 = vmatpush1.msra.mxu0 %v1261
    %1271 = vmatprep.subr.mxu0 0.0
    %1272 = vmatpush1.msra.mxu0 %v1262
    %1273 = vmatprep.subr.mxu0 0.0
    %1274 = vmatpush1.msra.mxu0 %v1263
    %1275 = vmatprep.subr.mxu0 0.0
    %1276 = vmatpush1.msra.mxu0 %v1264
    %1277 = vmatprep.subr.mxu0 0.0
    %1278 = vmatpush1.msra.mxu0 0.0
    %1279 = vmatprep.subr.mxu0 0.0
    %1280 = vmatpush1.msra.mxu0 0.0
    %1281 = vmatprep.subr.mxu0 0.0
    %1282 = vmatpush1.msra.mxu0 0.0
    %1283 = vmatprep.subr.mxu0 0.0
    %1284 = vmatpush1.msra.mxu0 0.0
    %1285 = vmatprep.subr.mxu0 0.0
    %1286 = vmatpush1.msra.mxu0 0.0
    %1287 = vmatprep.subr.mxu0 0.0
    %1288 = vmatpush1.msra.mxu0 0.0
    %1289 = vmatprep.subr.mxu0 0.0
    %1290 = vmatpush1.msra.mxu0 0.0
    %1291 = vmatprep.subr.mxu0 0.0
    %1292 = vmatpush1.msra.mxu0 0.0
    %1293 = vmatprep.subr.mxu0 0.0
    %1294 = vmatpush1.msra.mxu0 0.0
    %1295 = vmatprep.subr.mxu0 0.0
    %1296 = vmatpush1.msra.mxu0 0.0
    %1297 = vmatprep.subr.mxu0 0.0
    %1298 = vmatpush1.msra.mxu0 0.0
    %1299 = vmatprep.subr.mxu0 0.0
    %1300 = vmatpush1.msra.mxu0 0.0
    %1301 = vmatprep.subr.mxu0 0.0
    %1302 = vmatpush1.msra.mxu0 0.0
    %1303 = vmatprep.subr.mxu0 0.0
    %1304 = vmatpush1.msra.mxu0 0.0
    %1305 = vmatprep.subr.mxu0 0.0
    %1306 = vmatpush1.msra.mxu0 0.0
    %1307 = vmatprep.subr.mxu0 0.0
    %1308 = vmatpush1.msra.mxu0 0.0
    %1309 = vmatprep.subr.mxu0 0.0
    %1310 = vmatpush1.msra.mxu0 0.0
    %1311 = vmatprep.subr.mxu0 0.0
    %1312 = vmatpush1.msra.mxu0 0.0
    %1313 = vmatprep.subr.mxu0 0.0
    %1314 = vmatpush1.msra.mxu0 0.0
    %1315 = vmatprep.subr.mxu0 0.0
    %1316 = vmatpush1.msra.mxu0 0.0
    %1317 = vmatprep.subr.mxu0 0.0
    %1318 = vmatpush1.msra.mxu0 0.0
    %1319 = vmatprep.subr.mxu0 0.0
    %1320 = vmatpush1.msra.mxu0 0.0
    %1321 = vmatprep.subr.mxu0 0.0
    %1322 = vmatpush1.msra.mxu0 0.0
    %1323 = vmatprep.subr.mxu0 0.0
    %1324 = vmatpush1.msra.mxu0 0.0
    %1325 = vmatprep.subr.mxu0 0.0
    %1326 = vmatpush1.msra.mxu0 0.0
    %1327 = vmatprep.subr.mxu0 0.0
    %1328 = vmatpush1.msra.mxu0 0.0
    %1329 = vmatprep.subr.mxu0 0.0
    %1330 = vmatpush1.msra.mxu0 0.0
    %1331 = vmatprep.subr.mxu0 0.0
    %1332 = vmatpush1.msra.mxu0 0.0
    %1333 = vmatprep.mubr.f32.mxu0 0.0
    %1334 = vmatmul.mubr.f32.gmra.mrb[0].mxu0 %v1267
    %v1335 = vpop.f32.mrb[0].mxu0
    %v1336 = vadd.f32 0.0, %v1335
    %v1337 = vpop.f32.mrb[0].mxu0
    %1338 = vdwg.mxu0
    %v1339 = vld [vmem:[#allocation23] sm:$0xff]
    %v1340 = vld [vmem:[#allocation23 + $0x8] sm:$0xff]
    %vm1341 = vcmask 31744
    %v1343 = vsel %vm1341, %v1339, 0
    %v1346 = vsel %vm1341, %v1340, 0
    %vm1348 = vcmask 1043456
    %v1350 = vsel %vm1348, %v1336, 0
    %1352 = vmatprep.subr.mxu0 0.0
    %1353 = vmatpush1.msra.mxu0 %v1350
    %1354 = vmatprep.subr.mxu0 0.0
    %1355 = vmatpush1.msra.mxu0 0.0
    %1356 = vmatprep.subr.mxu0 0.0
    %1357 = vmatpush1.msra.mxu0 0.0
    %1358 = vmatprep.subr.mxu0 0.0
    %1359 = vmatpush1.msra.mxu0 0.0
    %1360 = vmatprep.subr.mxu0 0.0
    %1361 = vmatpush1.msra.mxu0 0.0
    %1362 = vmatprep.subr.mxu0 0.0
    %1363 = vmatpush1.msra.mxu0 0.0
    %1364 = vmatprep.subr.mxu0 0.0
    %1365 = vmatpush1.msra.mxu0 0.0
    %1366 = vmatprep.subr.mxu0 0.0
    %1367 = vmatpush1.msra.mxu0 0.0
    %1368 = vmatprep.subr.mxu0 0.0
    %1369 = vmatpush1.msra.mxu0 0.0
    %1370 = vmatprep.subr.mxu0 0.0
    %1371 = vmatpush1.msra.mxu0 0.0
    %1372 = vmatprep.subr.mxu0 0.0
    %1373 = vmatpush1.msra.mxu0 0.0
    %1374 = vmatprep.subr.mxu0 0.0
    %1375 = vmatpush1.msra.mxu0 0.0
    %1376 = vmatprep.subr.mxu0 0.0
    %1377 = vmatpush1.msra.mxu0 0.0
    %1378 = vmatprep.subr.mxu0 0.0
    %1379 = vmatpush1.msra.mxu0 0.0
    %1380 = vmatprep.subr.mxu0 0.0
    %1381 = vmatpush1.msra.mxu0 0.0
    %1382 = vmatprep.subr.mxu0 0.0
    %1383 = vmatpush1.msra.mxu0 0.0
    %1384 = vmatprep.subr.mxu0 0.0
    %1385 = vmatpush1.msra.mxu0 0.0
    %1386 = vmatprep.subr.mxu0 0.0
    %1387 = vmatpush1.msra.mxu0 0.0
    %1388 = vmatprep.subr.mxu0 0.0
    %1389 = vmatpush1.msra.mxu0 0.0
    %1390 = vmatprep.subr.mxu0 0.0
    %1391 = vmatpush1.msra.mxu0 0.0
    %1392 = vmatprep.subr.mxu0 0.0
    %1393 = vmatpush1.msra.mxu0 0.0
    %1394 = vmatprep.subr.mxu0 0.0
    %1395 = vmatpush1.msra.mxu0 0.0
    %1396 = vmatprep.subr.mxu0 0.0
    %1397 = vmatpush1.msra.mxu0 0.0
    %1398 = vmatprep.subr.mxu0 0.0
    %1399 = vmatpush1.msra.mxu0 0.0
    %1400 = vmatprep.subr.mxu0 0.0
    %1401 = vmatpush1.msra.mxu0 0.0
    %1402 = vmatprep.subr.mxu0 0.0
    %1403 = vmatpush1.msra.mxu0 0.0
    %1404 = vmatprep.subr.mxu0 0.0
    %1405 = vmatpush1.msra.mxu0 0.0
    %1406 = vmatprep.subr.mxu0 0.0
    %1407 = vmatpush1.msra.mxu0 0.0
    %1408 = vmatprep.subr.mxu0 0.0
    %1409 = vmatpush1.msra.mxu0 0.0
    %1410 = vmatprep.subr.mxu0 0.0
    %1411 = vmatpush1.msra.mxu0 0.0
    %1412 = vmatprep.subr.mxu0 0.0
    %1413 = vmatpush1.msra.mxu0 0.0
    %1414 = vmatprep.subr.mxu0 0.0
    %1415 = vmatpush1.msra.mxu0 0.0
    %1416 = vmatprep.mubr.f32.mxu0 0.0
    %1417 = vmatmul.mubr.f32.gmra.mrb[0].mxu0 %v1343
    %v1418 = vpop.f32.mrb[0].mxu0
    %v1419 = vadd.f32 0.0, %v1418
    %v1420 = vpop.f32.mrb[0].mxu0
    %1421 = vmatprep.mubr.f32.mxu0 0.0
    %1422 = vmatmul.mubr.f32.gmra.mrb[0].mxu0 %v1346
    %v1423 = vpop.f32.mrb[0].mxu0
    %v1424 = vadd.f32 0.0, %v1423
    %v1425 = vpop.f32.mrb[0].mxu0
    %1426 = vdwg.mxu0
    %v1427 = vadd.f32 %v1079, %v1419
    %v1428 = vadd.f32 %v1084, %v1424
    %v1429 = vld [vmem:[#allocation25] sm:$0x3]
    %v1431 = vsel %vm257, %v1429, 0
    %1433 = vmatprep.subr.mxu0 0.0
    %1434 = vmatpush1.msra.mxu0 %v358
    %1435 = vmatprep.subr.mxu0 0.0
    %1436 = vmatpush1.msra.mxu0 %v359
    %1437 = vmatprep.subr.mxu0 0.0
    %1438 = vmatpush1.msra.mxu0 0.0
    %1439 = vmatprep.subr.mxu0 0.0
    %1440 = vmatpush1.msra.mxu0 0.0
    %1441 = vmatprep.subr.mxu0 0.0
    %1442 = vmatpush1.msra.mxu0 0.0
    %1443 = vmatprep.subr.mxu0 0.0
    %1444 = vmatpush1.msra.mxu0 0.0
    %1445 = vmatprep.subr.mxu0 0.0
    %1446 = vmatpush1.msra.mxu0 0.0
    %1447 = vmatprep.subr.mxu0 0.0
    %1448 = vmatpush1.msra.mxu0 0.0
    %1449 = vmatprep.subr.mxu0 0.0
    %1450 = vmatpush1.msra.mxu0 0.0
    %1451 = vmatprep.subr.mxu0 0.0
    %1452 = vmatpush1.msra.mxu0 0.0
    %1453 = vmatprep.subr.mxu0 0.0
    %1454 = vmatpush1.msra.mxu0 0.0
    %1455 = vmatprep.subr.mxu0 0.0
    %1456 = vmatpush1.msra.mxu0 0.0
    %1457 = vmatprep.subr.mxu0 0.0
    %1458 = vmatpush1.msra.mxu0 0.0
    %1459 = vmatprep.subr.mxu0 0.0
    %1460 = vmatpush1.msra.mxu0 0.0
    %1461 = vmatprep.subr.mxu0 0.0
    %1462 = vmatpush1.msra.mxu0 0.0
    %1463 = vmatprep.subr.mxu0 0.0
    %1464 = vmatpush1.msra.mxu0 0.0
    %1465 = vmatprep.subr.mxu0 0.0
    %1466 = vmatpush1.msra.mxu0 0.0
    %1467 = vmatprep.subr.mxu0 0.0
    %1468 = vmatpush1.msra.mxu0 0.0
    %1469 = vmatprep.subr.mxu0 0.0
    %1470 = vmatpush1.msra.mxu0 0.0
    %1471 = vmatprep.subr.mxu0 0.0
    %1472 = vmatpush1.msra.mxu0 0.0
    %1473 = vmatprep.subr.mxu0 0.0
    %1474 = vmatpush1.msra.mxu0 0.0
    %1475 = vmatprep.subr.mxu0 0.0
    %1476 = vmatpush1.msra.mxu0 0.0
    %1477 = vmatprep.subr.mxu0 0.0
    %1478 = vmatpush1.msra.mxu0 0.0
    %1479 = vmatprep.subr.mxu0 0.0
    %1480 = vmatpush1.msra.mxu0 0.0
    %1481 = vmatprep.subr.mxu0 0.0
    %1482 = vmatpush1.msra.mxu0 0.0
    %1483 = vmatprep.subr.mxu0 0.0
    %1484 = vmatpush1.msra.mxu0 0.0
    %1485 = vmatprep.subr.mxu0 0.0
    %1486 = vmatpush1.msra.mxu0 0.0
    %1487 = vmatprep.subr.mxu0 0.0
    %1488 = vmatpush1.msra.mxu0 0.0
    %1489 = vmatprep.subr.mxu0 0.0
    %1490 = vmatpush1.msra.mxu0 0.0
    %1491 = vmatprep.subr.mxu0 0.0
    %1492 = vmatpush1.msra.mxu0 0.0
    %1493 = vmatprep.subr.mxu0 0.0
    %1494 = vmatpush1.msra.mxu0 0.0
    %1495 = vmatprep.subr.mxu0 0.0
    %1496 = vmatpush1.msra.mxu0 0.0
    %1497 = vmatprep.mubr.f32.mxu0 0.0
    %1498 = vmatmul.mubr.f32.gmra.mrb[0].mxu0 %v1431
    %v1499 = vpop.f32.mrb[0].mxu0
    %v1500 = vadd.f32 0.0, %v1499
    %v1501 = vpop.f32.mrb[0].mxu0
    %1502 = vdwg.mxu0
    %v1503 = vld [vmem:[#allocation26] sm:$0xff]
    %v1504 = vld [vmem:[#allocation26 + $0x8] sm:$0xff]
    %v1505 = vld [vmem:[#allocation26 + $0x10] sm:$0xff]
    %v1506 = vld [vmem:[#allocation26 + $0x18] sm:$0xff]
    %v1507 = vld [vmem:[#allocation26 + $0x20] sm:$0xff]
    %v1508 = vld [vmem:[#allocation26 + $0x28] sm:$0xff]
    %v1509 = vld [vmem:[#allocation26 + $0x30] sm:$0xff]
    %v1510 = vld [vmem:[#allocation26 + $0x38] sm:$0xff]
    %v1511 = vld [vmem:[#allocation26 + $0x40] sm:$0xff]
    %v1512 = vld [vmem:[#allocation26 + $0x48] sm:$0xff]
    %v1513 = vld [vmem:[#allocation26 + $0x50] sm:$0xff]
    %v1514 = vld [vmem:[#allocation26 + $0x58] sm:$0xff]
    %v1515 = vld [vmem:[#allocation26 + $0x60] sm:$0xff]
    %v1516 = vld [vmem:[#allocation26 + $0x68] sm:$0xff]
    %v1517 = vld [vmem:[#allocation26 + $0x70] sm:$0xff]
    %v1518 = vld [vmem:[#allocation26 + $0x78] sm:$0xff]
    %1519 = vmatprep.subr.mxu0 0.0
    %1520 = vmatpush1.msra.mxu0 %v1503
    %1521 = vmatprep.subr.mxu0 0.0
    %1522 = vmatpush1.msra.mxu0 %v1504
    %1523 = vmatprep.subr.mxu0 0.0
    %1524 = vmatpush1.msra.mxu0 %v1505
    %1525 = vmatprep.subr.mxu0 0.0
    %1526 = vmatpush1.msra.mxu0 %v1506
    %1527 = vmatprep.subr.mxu0 0.0
    %1528 = vmatpush1.msra.mxu0 %v1507
    %1529 = vmatprep.subr.mxu0 0.0
    %1530 = vmatpush1.msra.mxu0 %v1508
    %1531 = vmatprep.subr.mxu0 0.0
    %1532 = vmatpush1.msra.mxu0 %v1509
    %1533 = vmatprep.subr.mxu0 0.0
    %1534 = vmatpush1.msra.mxu0 %v1510
    %1535 = vmatprep.subr.mxu0 0.0
    %1536 = vmatpush1.msra.mxu0 %v1511
    %1537 = vmatprep.subr.mxu0 0.0
    %1538 = vmatpush1.msra.mxu0 %v1512
    %1539 = vmatprep.subr.mxu0 0.0
    %1540 = vmatpush1.msra.mxu0 %v1513
    %1541 = vmatprep.subr.mxu0 0.0
    %1542 = vmatpush1.msra.mxu0 %v1514
    %1543 = vmatprep.subr.mxu0 0.0
    %1544 = vmatpush1.msra.mxu0 %v1515
    %1545 = vmatprep.subr.mxu0 0.0
    %1546 = vmatpush1.msra.mxu0 %v1516
    %1547 = vmatprep.subr.mxu0 0.0
    %1548 = vmatpush1.msra.mxu0 %v1517
    %1549 = vmatprep.subr.mxu0 0.0
    %1550 = vmatpush1.msra.mxu0 %v1518
    %1551 = vmatprep.subr.mxu0 0.0
    %1552 = vmatpush1.msra.mxu0 0.0
    %1553 = vmatprep.subr.mxu0 0.0
    %1554 = vmatpush1.msra.mxu0 0.0
    %1555 = vmatprep.subr.mxu0 0.0
    %1556 = vmatpush1.msra.mxu0 0.0
    %1557 = vmatprep.subr.mxu0 0.0
    %1558 = vmatpush1.msra.mxu0 0.0
    %1559 = vmatprep.subr.mxu0 0.0
    %1560 = vmatpush1.msra.mxu0 0.0
    %1561 = vmatprep.subr.mxu0 0.0
    %1562 = vmatpush1.msra.mxu0 0.0
    %1563 = vmatprep.subr.mxu0 0.0
    %1564 = vmatpush1.msra.mxu0 0.0
    %1565 = vmatprep.subr.mxu0 0.0
    %1566 = vmatpush1.msra.mxu0 0.0
    %1567 = vmatprep.subr.mxu0 0.0
    %1568 = vmatpush1.msra.mxu0 0.0
    %1569 = vmatprep.subr.mxu0 0.0
    %1570 = vmatpush1.msra.mxu0 0.0
    %1571 = vmatprep.subr.mxu0 0.0
    %1572 = vmatpush1.msra.mxu0 0.0
    %1573 = vmatprep.subr.mxu0 0.0
    %1574 = vmatpush1.msra.mxu0 0.0
    %1575 = vmatprep.subr.mxu0 0.0
    %1576 = vmatpush1.msra.mxu0 0.0
    %1577 = vmatprep.subr.mxu0 0.0
    %1578 = vmatpush1.msra.mxu0 0.0
    %1579 = vmatprep.subr.mxu0 0.0
    %1580 = vmatpush1.msra.mxu0 0.0
    %1581 = vmatprep.subr.mxu0 0.0
    %1582 = vmatpush1.msra.mxu0 0.0
    %1583 = vmatprep.mubr.f32.mxu0 0.0
    %1584 = vmatmul.mubr.f32.gmra.mrb[0].mxu0 %v1500
    %v1585 = vpop.f32.mrb[0].mxu0
    %v1586 = vadd.f32 0.0, %v1585
    %v1587 = vpop.f32.mrb[0].mxu0
    %1588 = vdwg.mxu0
    %vm1589 = vcmp.lt.s32.totalorder %v547, 1
    %vm1590 = vcmp.lt.s32.totalorder %v550, 8
    %v1591 = vstv %s369
    %v1592 = vsel %vm1590, 0.0, %v1591
    %v1593 = vstv %s370
    %v1594 = vstv %s371
    %v1595 = vsel %vm1590, %v1593, %v1594
    %v1596 = vsel %vm1589, %v1592, %v1595
    %v1597 = vsub.f32 %v1586, %v1596
    %v1598 = vmax.f32 %v1597, 0.0
    %v1599 = vsub.f32 0.0, %v1586
    %v1600 = vsub.f32 %v1599, %v1596
    %v1601 = vmax.f32 %v1600, 0.0
    %v1602 = vsub.f32 %v1598, %v1601
    %v1603 = vld [vmem:[%s17] sm:$0xff]
    %v1604 = vld [vmem:[%s17 + $0x8] sm:$0xff]
    %v1606 = vsel %vm257, %v1602, 0
    %1608 = vmatprep.subr.mxu0 0.0
    %1609 = vmatpush1.msra.mxu0 %v1603
    %1610 = vmatprep.subr.mxu0 0.0
    %1611 = vmatpush1.msra.mxu0 %v1604
    %1612 = vmatprep.subr.mxu0 0.0
    %1613 = vmatpush1.msra.mxu0 0.0
    %1614 = vmatprep.subr.mxu0 0.0
    %1615 = vmatpush1.msra.mxu0 0.0
    %1616 = vmatprep.subr.mxu0 0.0
    %1617 = vmatpush1.msra.mxu0 0.0
    %1618 = vmatprep.subr.mxu0 0.0
    %1619 = vmatpush1.msra.mxu0 0.0
    %1620 = vmatprep.subr.mxu0 0.0
    %1621 = vmatpush1.msra.mxu0 0.0
    %1622 = vmatprep.subr.mxu0 0.0
    %1623 = vmatpush1.msra.mxu0 0.0
    %1624 = vmatprep.subr.mxu0 0.0
    %1625 = vmatpush1.msra.mxu0 0.0
    %1626 = vmatprep.subr.mxu0 0.0
    %1627 = vmatpush1.msra.mxu0 0.0
    %1628 = vmatprep.subr.mxu0 0.0
    %1629 = vmatpush1.msra.mxu0 0.0
    %1630 = vmatprep.subr.mxu0 0.0
    %1631 = vmatpush1.msra.mxu0 0.0
    %1632 = vmatprep.subr.mxu0 0.0
    %1633 = vmatpush1.msra.mxu0 0.0
    %1634 = vmatprep.subr.mxu0 0.0
    %1635 = vmatpush1.msra.mxu0 0.0
    %1636 = vmatprep.subr.mxu0 0.0
    %1637 = vmatpush1.msra.mxu0 0.0
    %1638 = vmatprep.subr.mxu0 0.0
    %1639 = vmatpush1.msra.mxu0 0.0
    %1640 = vmatprep.subr.mxu0 0.0
    %1641 = vmatpush1.msra.mxu0 0.0
    %1642 = vmatprep.subr.mxu0 0.0
    %1643 = vmatpush1.msra.mxu0 0.0
    %1644 = vmatprep.subr.mxu0 0.0
    %1645 = vmatpush1.msra.mxu0 0.0
    %1646 = vmatprep.subr.mxu0 0.0
    %1647 = vmatpush1.msra.mxu0 0.0
    %1648 = vmatprep.subr.mxu0 0.0
    %1649 = vmatpush1.msra.mxu0 0.0
    %1650 = vmatprep.subr.mxu0 0.0
    %1651 = vmatpush1.msra.mxu0 0.0
    %1652 = vmatprep.subr.mxu0 0.0
    %1653 = vmatpush1.msra.mxu0 0.0
    %1654 = vmatprep.subr.mxu0 0.0
    %1655 = vmatpush1.msra.mxu0 0.0
    %1656 = vmatprep.subr.mxu0 0.0
    %1657 = vmatpush1.msra.mxu0 0.0
    %1658 = vmatprep.subr.mxu0 0.0
    %1659 = vmatpush1.msra.mxu0 0.0
    %1660 = vmatprep.subr.mxu0 0.0
    %1661 = vmatpush1.msra.mxu0 0.0
    %1662 = vmatprep.subr.mxu0 0.0
    %1663 = vmatpush1.msra.mxu0 0.0
    %1664 = vmatprep.subr.mxu0 0.0
    %1665 = vmatpush1.msra.mxu0 0.0
    %1666 = vmatprep.subr.mxu0 0.0
    %1667 = vmatpush1.msra.mxu0 0.0
    %1668 = vmatprep.subr.mxu0 0.0
    %1669 = vmatpush1.msra.mxu0 0.0
    %1670 = vmatprep.subr.mxu0 0.0
    %1671 = vmatpush1.msra.mxu0 0.0
    %1672 = vmatprep.mubr.f32.mxu0 0.0
    %1673 = vmatmul.mubr.f32.gmra.mrb[0].mxu0 %v1606
    %v1674 = vpop.f32.mrb[0].mxu0
    %v1675 = vadd.f32 0.0, %v1674
    %v1676 = vpop.f32.mrb[0].mxu0
    %1677 = vdwg.mxu0
    %v1678 = vld [vmem:[%s16] sm:$0xff]
    %v1679 = vld [vmem:[%s16 + $0x8] sm:$0xff]
    %vm1680 = vcmask 15360
    %v1682 = vsel %vm1680, %v1678, 0
    %v1685 = vsel %vm1680, %v1679, 0
    %vm1687 = vcmask 1041408
    %v1689 = vsel %vm1687, %v1675, 0
    %1691 = vmatprep.subr.mxu0 0.0
    %1692 = vmatpush1.msra.mxu0 %v1689
    %1693 = vmatprep.subr.mxu0 0.0
    %1694 = vmatpush1.msra.mxu0 0.0
    %1695 = vmatprep.subr.mxu0 0.0
    %1696 = vmatpush1.msra.mxu0 0.0
    %1697 = vmatprep.subr.mxu0 0.0
    %1698 = vmatpush1.msra.mxu0 0.0
    %1699 = vmatprep.subr.mxu0 0.0
    %1700 = vmatpush1.msra.mxu0 0.0
    %1701 = vmatprep.subr.mxu0 0.0
    %1702 = vmatpush1.msra.mxu0 0.0
    %1703 = vmatprep.subr.mxu0 0.0
    %1704 = vmatpush1.msra.mxu0 0.0
    %1705 = vmatprep.subr.mxu0 0.0
    %1706 = vmatpush1.msra.mxu0 0.0
    %1707 = vmatprep.subr.mxu0 0.0
    %1708 = vmatpush1.msra.mxu0 0.0
    %1709 = vmatprep.subr.mxu0 0.0
    %1710 = vmatpush1.msra.mxu0 0.0
    %1711 = vmatprep.subr.mxu0 0.0
    %1712 = vmatpush1.msra.mxu0 0.0
    %1713 = vmatprep.subr.mxu0 0.0
    %1714 = vmatpush1.msra.mxu0 0.0
    %1715 = vmatprep.subr.mxu0 0.0
    %1716 = vmatpush1.msra.mxu0 0.0
    %1717 = vmatprep.subr.mxu0 0.0
    %1718 = vmatpush1.msra.mxu0 0.0
    %1719 = vmatprep.subr.mxu0 0.0
    %1720 = vmatpush1.msra.mxu0 0.0
    %1721 = vmatprep.subr.mxu0 0.0
    %1722 = vmatpush1.msra.mxu0 0.0
    %1723 = vmatprep.subr.mxu0 0.0
    %1724 = vmatpush1.msra.mxu0 0.0
    %1725 = vmatprep.subr.mxu0 0.0
    %1726 = vmatpush1.msra.mxu0 0.0
    %1727 = vmatprep.subr.mxu0 0.0
    %1728 = vmatpush1.msra.mxu0 0.0
    %1729 = vmatprep.subr.mxu0 0.0
    %1730 = vmatpush1.msra.mxu0 0.0
    %1731 = vmatprep.subr.mxu0 0.0
    %1732 = vmatpush1.msra.mxu0 0.0
    %1733 = vmatprep.subr.mxu0 0.0
    %1734 = vmatpush1.msra.mxu0 0.0
    %1735 = vmatprep.subr.mxu0 0.0
    %1736 = vmatpush1.msra.mxu0 0.0
    %1737 = vmatprep.subr.mxu0 0.0
    %1738 = vmatpush1.msra.mxu0 0.0
    %1739 = vmatprep.subr.mxu0 0.0
    %1740 = vmatpush1.msra.mxu0 0.0
    %1741 = vmatprep.subr.mxu0 0.0
    %1742 = vmatpush1.msra.mxu0 0.0
    %1743 = vmatprep.subr.mxu0 0.0
    %1744 = vmatpush1.msra.mxu0 0.0
    %1745 = vmatprep.subr.mxu0 0.0
    %1746 = vmatpush1.msra.mxu0 0.0
    %1747 = vmatprep.subr.mxu0 0.0
    %1748 = vmatpush1.msra.mxu0 0.0
    %1749 = vmatprep.subr.mxu0 0.0
    %1750 = vmatpush1.msra.mxu0 0.0
    %1751 = vmatprep.subr.mxu0 0.0
    %1752 = vmatpush1.msra.mxu0 0.0
    %1753 = vmatprep.subr.mxu0 0.0
    %1754 = vmatpush1.msra.mxu0 0.0
    %1755 = vmatprep.mubr.f32.mxu0 0.0
    %1756 = vmatmul.mubr.f32.gmra.mrb[0].mxu0 %v1682
    %v1757 = vpop.f32.mrb[0].mxu0
    %v1758 = vadd.f32 0.0, %v1757
    %v1759 = vpop.f32.mrb[0].mxu0
    %1760 = vmatprep.mubr.f32.mxu0 0.0
    %1761 = vmatmul.mubr.f32.gmra.mrb[0].mxu0 %v1685
    %v1762 = vpop.f32.mrb[0].mxu0
    %v1763 = vadd.f32 0.0, %v1762
    %v1764 = vpop.f32.mrb[0].mxu0
    %1765 = vdwg.mxu0
    %v1766 = vadd.f32 %v1427, %v1758
    %v1767 = vadd.f32 %v1428, %v1763
    %1768 = vst [vmem:[#allocation2] sm:$0xff] %v1766
    %1769 = vst [vmem:[#allocation2 + $0x8] sm:$0xff] %v1767
    %v1770 = vld [vmem:[#allocation2] sm:$0xff]
    %v1771 = vld [vmem:[#allocation2 + $0x8] sm:$0xff]
    %1772 = vst.msk [vmem:[#allocation28] sm:$0xff] %vm257, %v1770
    %1773 = vst.msk [vmem:[#allocation28 + $0x8] sm:$0xff] %vm257, %v1771
    %v1774 = vld [vmem:[#allocation2] sm:$0xff]
    %v1775 = vld [vmem:[#allocation2 + $0x8] sm:$0xff]
    %1778 = vrot.lane.b32.xlu0 %v1774, 112
    %v1779 = vpop.permute.xlu0 %1778
    %1780 = vrot.lane.b32.xlu0 %v1775, 112
    %v1781 = vpop.permute.xlu0 %1780
    %s1784 = scalar_lea.vmem [#allocation28], 16
    %1785 = vst.msk [vmem:[%s1784] sm:$0xff] %vm257, %v1779
    %1786 = vst.msk [vmem:[%s1784 + $0x8] sm:$0xff] %vm257, %v1781
    %v1787 = vld [vmem:[#allocation2] sm:$0xff]
    %v1788 = vld [vmem:[#allocation2 + $0x8] sm:$0xff]
    %1791 = vrot.lane.b32.xlu0 %v1787, 96
    %v1792 = vpop.permute.xlu0 %1791
    %1793 = vrot.lane.b32.xlu0 %v1788, 96
    %v1794 = vpop.permute.xlu0 %1793
    %s1797 = scalar_lea.vmem [#allocation28], 32
    %1798 = vst.msk [vmem:[%s1797] sm:$0xff] %vm257, %v1792
    %1799 = vst.msk [vmem:[%s1797 + $0x8] sm:$0xff] %vm257, %v1794
    %v1800 = vld [vmem:[#allocation2] sm:$0xff]
    %v1801 = vld [vmem:[#allocation2 + $0x8] sm:$0xff]
    %1804 = vrot.lane.b32.xlu0 %v1800, 80
    %v1805 = vpop.permute.xlu0 %1804
    %1806 = vrot.lane.b32.xlu0 %v1801, 80
    %v1807 = vpop.permute.xlu0 %1806
    %s1810 = scalar_lea.vmem [#allocation28], 48
    %1811 = vst.msk [vmem:[%s1810] sm:$0xff] %vm257, %v1805
    %1812 = vst.msk [vmem:[%s1810 + $0x8] sm:$0xff] %vm257, %v1807
    %v1813 = vld [vmem:[#allocation2] sm:$0xff]
    %v1814 = vld [vmem:[#allocation2 + $0x8] sm:$0xff]
    %1817 = vrot.lane.b32.xlu0 %v1813, 64
    %v1818 = vpop.permute.xlu0 %1817
    %1819 = vrot.lane.b32.xlu0 %v1814, 64
    %v1820 = vpop.permute.xlu0 %1819
    %s1823 = scalar_lea.vmem [#allocation28], 64
    %1824 = vst.msk [vmem:[%s1823] sm:$0xff] %vm257, %v1818
    %1825 = vst.msk [vmem:[%s1823 + $0x8] sm:$0xff] %vm257, %v1820
    %v1826 = vld [vmem:[#allocation2] sm:$0xff]
    %v1827 = vld [vmem:[#allocation2 + $0x8] sm:$0xff]
    %1830 = vrot.lane.b32.xlu0 %v1826, 48
    %v1831 = vpop.permute.xlu0 %1830
    %1832 = vrot.lane.b32.xlu0 %v1827, 48
    %v1833 = vpop.permute.xlu0 %1832
    %s1836 = scalar_lea.vmem [#allocation28], 80
    %1837 = vst.msk [vmem:[%s1836] sm:$0xff] %vm257, %v1831
    %1838 = vst.msk [vmem:[%s1836 + $0x8] sm:$0xff] %vm257, %v1833
    %v1839 = vld [vmem:[#allocation2] sm:$0xff]
    %v1840 = vld [vmem:[#allocation2 + $0x8] sm:$0xff]
    %1843 = vrot.lane.b32.xlu0 %v1839, 32
    %v1844 = vpop.permute.xlu0 %1843
    %1845 = vrot.lane.b32.xlu0 %v1840, 32
    %v1846 = vpop.permute.xlu0 %1845
    %s1849 = scalar_lea.vmem [#allocation28], 96
    %1850 = vst.msk [vmem:[%s1849] sm:$0xff] %vm257, %v1844
    %1851 = vst.msk [vmem:[%s1849 + $0x8] sm:$0xff] %vm257, %v1846
    %v1852 = vld [vmem:[#allocation2] sm:$0xff]
    %v1853 = vld [vmem:[#allocation2 + $0x8] sm:$0xff]
    %1856 = vrot.lane.b32.xlu0 %v1852, 16
    %v1857 = vpop.permute.xlu0 %1856
    %1858 = vrot.lane.b32.xlu0 %v1853, 16
    %v1859 = vpop.permute.xlu0 %1858
    %s1862 = scalar_lea.vmem [#allocation28], 112
    %1863 = vst.msk [vmem:[%s1862] sm:$0xff] %vm257, %v1857
    %1864 = vst.msk [vmem:[%s1862 + $0x8] sm:$0xff] %vm257, %v1859
    // Predicated region
    $region134: #{haar_soft_threshold_2d.1} parent=1 // pred_check
      _
    $region135: #{haar_soft_threshold_2d.1} parent=1 // pred_check_branch
      %1866 = sbr.rel (0) target = $region137
    $region136: #{haar_soft_threshold_2d.1} parent=1 // pred_region
      %s1868 = ssub.s32 2048, 2048
      %1869 = vsyncadd [#allocation5], %s1868
      %s1870 = sshll.u32 [#allocation28], 4
      %s1871 = int_to_ptr.vmem [resolvable:$true] %s1870
      %1876 = dma.vmem_to_hbm [thread:$0]  %s1871, 2048, %s18, [#allocation5], 128, 128, 8
    $region137: #{haar_soft_threshold_2d.1} parent=1 // pred_fallthru
      _
    // Predicated region
    $region138: #{haar_soft_threshold_2d.1} parent=1 // pred_check
      _
    $region139: #{haar_soft_threshold_2d.1} parent=1 // pred_check_branch
      %1878 = sbr.rel (0) target = $region141
    $region140: #{haar_soft_threshold_2d.1} parent=1 // pred_region
      %1879 = dma.done [#allocation5], 2048
    $region141: #{haar_soft_threshold_2d.1} parent=1 // pred_fallthru
      _
    %1880 = vsyncpa [#allocation4], 1
    %1881 = vsyncpa [#allocation9], 1
    %1882 = vsyncpa [#allocation12], 1
    %1883 = vsyncpa [#allocation15], 1
    %1884 = vsyncpa [#allocation18], 1
    %1885 = vsyncpa [#allocation21], 1
    %1886 = vsyncpa [#allocation24], 1
    %1887 = vsyncpa [#allocation27], 1
    %1888 = vsyncpa [#allocation5], 1
    %1889 = vsyncpa [#allocation6], 1

</llo_original>
